<compile_context>
chip_gen: v6e
topology: v6e:2x2x1
jax: 0.10.0
libtpu: 0.0.40
codegen_flags: <defaults>
</compile_context>

<pallas_src>
import jax
import jax.numpy as jnp
from jax.experimental import pallas as pl
from jax.experimental.pallas import tpu as pltpu


_SQRT_HALF = 0.7071067811865476


def _erf(z):
    # Abramowitz & Stegun 7.1.26 (|err| <= 1.5e-7).  The 1/(1+p|z|) divide is replaced by
    # the EUP approximate reciprocal + one Newton-Raphson step (full f32-ish accuracy,
    # no multi-op VALU divide sequence).
    a1, a2, a3, a4, a5 = 0.254829592, -0.284496736, 1.421413741, -1.453152027, 1.061405429
    p = 0.3275911
    s = jnp.where(z >= 0.0, 1.0, -1.0)
    x = z * s                                   # |z|
    d = 1.0 + p * x
    t0 = pl.reciprocal(d, approx=True)
    t = t0 * (2.0 - d * t0)                     # one NR refinement
    poly = ((((a5 * t + a4) * t + a3) * t + a2) * t + a1) * t
    return s * (1.0 - poly * jnp.exp(-x * x))


def _gelu(x):
    # exact GELU: 0.5 * x * (1 + erf(x / sqrt(2)))  -- matches torch.nn.GELU() default
    return 0.5 * x * (1.0 + _erf(x * _SQRT_HALF))


def _subsample6_kernel(x_ref, w1_ref, b1_ref, w2_ref, b2_ref, w3_ref, b3_ref,
                       o_ref, h1_ref, h2_ref):
    """One grid step = BB batch elements.

    x_ref : (BB, Tx, C)        input block, Tx = M1 + 2
    w*_ref: (3*Cin_pad, Np)    bf16 im2col-flattened, lane-padded conv weights
    b*_ref: (1, Np)            f32 lane-padded biases
    o_ref : (BB*M3, Np)        lane-dense output slab (per-batch bands of M3 rows)
    h1_ref: (BB*M1 + 8, Np)    f32 conv1 activations (stride-2 source, 8 pad rows)
    h2_ref: (BB*M2, Np)        f32 conv2 activations (stride-3 source)
    """
    BB, Tx, C = x_ref.shape
    rows_out, Np = o_ref.shape
    M3 = rows_out // BB
    M2 = 3 * M3
    M1 = 2 * M2                       # == Tx - 2; all of M1, M2, M3 are multiples of 8

    # ---- conv1 (k=3, s=1): 3 narrow taps -> lane concat -> one tall MXU matmul ----
    # Taps are read from the ref (static starts) and cast on the narrow C-wide slices.
    taps1 = [x_ref[:, pl.ds(j, M1), :].astype(jnp.bfloat16) for j in range(3)]
    c1 = jnp.concatenate(taps1, axis=-1)                    # (BB, M1, 3C)
    c1 = c1.reshape(BB * M1, 3 * C)                         # M1 % 8 == 0 -> aligned merge
    h1 = jnp.dot(c1, w1_ref[...], preferred_element_type=jnp.float32) + b1_ref[...]
    h1_ref[pl.ds(0, BB * M1), :] = _gelu(h1)                # aligned full-tile f32 store
    # 8 pad rows: only over-read by the j=2 tap below, and only into junk output rows.
    h1_ref[pl.ds(BB * M1, 8), :] = jnp.zeros((8, Np), jnp.float32)

    # ---- conv2 (k=3, s=2): batch-uniform GLOBAL strided gathers (M1 == 2*M2) ----
    c2 = jnp.concatenate(
        [h1_ref[pl.ds(j, BB * M2, stride=2), :].astype(jnp.bfloat16) for j in range(3)],
        axis=-1)                                            # (BB*M2, 3*Np)
    h2 = jnp.dot(c2, w2_ref[...], preferred_element_type=jnp.float32) + b2_ref[...]
    h2_ref[...] = _gelu(h2)                                 # aligned full-tile store

    # ---- conv3 (k=3, s=3): M2 == 3*M3 ----
    c3 = jnp.concatenate(
        [h2_ref[pl.ds(j, BB * M3, stride=3), :].astype(jnp.bfloat16) for j in range(3)],
        axis=-1)                                            # (BB*M3, 3*Np)
    h3 = jnp.dot(c3, w3_ref[...], preferred_element_type=jnp.float32) + b3_ref[...]
    o_ref[...] = _gelu(h3).astype(o_ref.dtype)              # single lane-dense full-tile store


def _flatten_weight(w, cin_pad, cout_pad):
    """(Cout, Cin, K) PyTorch conv weight -> (K*cin_pad, cout_pad) bf16 im2col matrix,
    zero-padded per tap along input channels and along output channels."""
    cout, cin, k = w.shape
    wf = jnp.transpose(w, (2, 1, 0))                          # (K, Cin, Cout); wf[j,c,o]=w[o,c,j]
    wf = jnp.pad(wf, ((0, 0), (0, cin_pad - cin), (0, cout_pad - cout)))
    return wf.reshape(k * cin_pad, cout_pad).astype(jnp.bfloat16)


def gxl_conv1d_subsampling6(x, params, *, block_b=None):
    """x: (B, T, idim). params: PyTorch-layout weights {w1,b1,w2,b2,w3,b3},
    w*: (odim, cin, 3), b*: (odim,).  Returns (B, T3, odim) float32."""
    B, T, C = x.shape
    w1, b1 = params["w1"], params["b1"]
    w2, b2 = params["w2"], params["b2"]
    w3, b3 = params["w3"], params["b3"]
    odim, K = w1.shape[0], w1.shape[2]
    assert K == 3 and w2.shape[2] == 3 and w3.shape[2] == 3

    T1 = T - 2                       # conv1: k=3, s=1, VALID
    T2 = (T1 - 3) // 2 + 1           # conv2: k=3, s=2
    T3 = (T2 - 3) // 3 + 1           # conv3: k=3, s=3
    assert T3 >= 1, "sequence too short for the three-stage subsampling"

    # Per-batch padded band lengths.  M3 > T3 guarantees that the only rows touched by the
    # cross-band / pad taps of the global strided gathers are junk rows (sliced off below);
    # M2 = 3*M3 and M1 = 2*M2 make the stride-3 / stride-2 gathers batch-uniform.
    M3 = (T3 // 8 + 1) * 8
    M2 = 3 * M3
    M1 = 2 * M2
    Tx = M1 + 2

    # Pad (or truncate) time to Tx.  Truncation is safe: real output rows only ever read
    # x[:, : 6*T3 + 3, :] and 6*T3 + 3 <= Tx.
    if T < Tx:
        x = jnp.pad(x, ((0, 0), (0, Tx - T), (0, 0)))
    elif T > Tx:
        x = x[:, :Tx, :]

    Np = ((odim + 127) // 128) * 128          # lane-pad Cout: unmasked, lane-dense stores

    # ---- batch block size: VMEM-aware (~24 MiB working set keeps v7x's 64 MiB happy) ----
    x_item = jnp.dtype(x.dtype).itemsize
    per_batch = (2 * Tx * C * x_item                       # double-buffered input block
                 + 2 * M3 * Np * 4                         # double-buffered output block
                 + (M1 + 8) * Np * 4 + M2 * Np * 4         # f32 activation scratch
                 + M1 * (3 * C * 2 + Np * 4)               # conv1 im2col + f32 activation value
                 + M2 * (3 * Np * 2 + Np * 4)              # conv2
                 + M3 * (3 * Np * 2 + Np * 4))             # conv3
    w_bytes = 2 * 2 * (3 * C * Np + 2 * 3 * Np * Np)       # double-buffered bf16 weights
    if block_b is None:
        budget = 24 * 1024 * 1024
        bb_cap = max(1, (budget - w_bytes) // max(per_batch, 1))
        block_b = max(1, min(B, 8, bb_cap))
        if B > 1:            # keep >= 2 parallel grid steps so both v7x TensorCores get work
            block_b = min(block_b, (B + 1) // 2)
    BB = int(block_b)
    n_blocks = -(-B // BB)
    Bp = BB * n_blocks
    if Bp != B:                                            # pad batch to a multiple of BB
        x = jnp.pad(x, ((0, Bp - B), (0, 0), (0, 0)))

    w1f = _flatten_weight(w1, C, Np)
    w2f = _flatten_weight(w2, Np, Np)
    w3f = _flatten_weight(w3, Np, Np)
    b1r = jnp.pad(b1.astype(jnp.float32), (0, Np - odim)).reshape(1, Np)
    b2r = jnp.pad(b2.astype(jnp.float32), (0, Np - odim)).reshape(1, Np)
    b3r = jnp.pad(b3.astype(jnp.float32), (0, Np - odim)).reshape(1, Np)

    vmem_limit = int(min(max(2 * (BB * per_batch + w_bytes), 32 * 1024 * 1024),
                         100 * 1024 * 1024))

    grid_spec = pltpu.PrefetchScalarGridSpec(
        num_scalar_prefetch=0,
        grid=(n_blocks,),
        in_specs=[
            pl.BlockSpec((BB, Tx, C), lambda b: (b, 0, 0)),      # x (native dtype, cast in-kernel)
            pl.BlockSpec((K * C, Np), lambda b: (0, 0)),         # conv1 weight (im2col layout)
            pl.BlockSpec((1, Np), lambda b: (0, 0)),             # conv1 bias
            pl.BlockSpec((K * Np, Np), lambda b: (0, 0)),        # conv2 weight
            pl.BlockSpec((1, Np), lambda b: (0, 0)),             # conv2 bias
            pl.BlockSpec((K * Np, Np), lambda b: (0, 0)),        # conv3 weight
            pl.BlockSpec((1, Np), lambda b: (0, 0)),             # conv3 bias
        ],
        out_specs=pl.BlockSpec((BB * M3, Np), lambda b: (b, 0)),
        scratch_shapes=[
            pltpu.VMEM((BB * M1 + 8, Np), jnp.float32),   # conv1 activations (stride-2 source)
            pltpu.VMEM((BB * M2, Np), jnp.float32),       # conv2 activations (stride-3 source)
        ],
    )

    y = pl.pallas_call(
        _subsample6_kernel,
        out_shape=jax.ShapeDtypeStruct((Bp * M3, Np), jnp.float32),
        grid_spec=grid_spec,
        compiler_params=pltpu.CompilerParams(
            dimension_semantics=("parallel",),
            vmem_limit_bytes=vmem_limit,
        ),
    )(x, w1f, b1r, w2f, b2r, w3f, b3r)

    return y.reshape(Bp, M3, Np)[:B, :T3, :odim]


def _ref_forward(x, params, *, quantize):
    """Pure-JAX reference of the PyTorch forward (im2col formulation == exact VALID conv).
    quantize=True mirrors the kernel's bf16 matmul operands with f32 accumulation."""
    def conv_gelu(h, w, b, stride):
        cout, cin, k = w.shape
        tin = h.shape[1]
        tout = (tin - k) // stride + 1
        cols = jnp.concatenate(
            [h[:, j:j + stride * (tout - 1) + 1:stride, :] for j in range(k)], axis=-1)
        wf = jnp.transpose(w, (2, 1, 0)).reshape(k * cin, cout)
        if quantize:
            cols = cols.astype(jnp.bfloat16)
            wf = wf.astype(jnp.bfloat16)
        y = jnp.dot(cols, wf, preferred_element_type=jnp.float32) + b.astype(jnp.float32)
        return jax.nn.gelu(y, approximate=False)            # exact (erf) GELU

    h = conv_gelu(x.astype(jnp.float32), params["w1"], params["b1"], 1)
    h = conv_gelu(h, params["w2"], params["b2"], 2)
    h = conv_gelu(h, params["w3"], params["b3"], 3)
    return h


if __name__ == "__main__":
    B, T, idim, odim = 2, 32, 16, 32

    key = jax.random.PRNGKey(0)
    ks = jax.random.split(key, 7)
    params = {
        "w1": 0.1 * jax.random.normal(ks[0], (odim, idim, 3), jnp.float32),
        "b1": 0.1 * jax.random.normal(ks[1], (odim,), jnp.float32),
        "w2": 0.1 * jax.random.normal(ks[2], (odim, odim, 3), jnp.float32),
        "b2": 0.1 * jax.random.normal(ks[3], (odim,), jnp.float32),
        "w3": 0.1 * jax.random.normal(ks[4], (odim, odim, 3), jnp.float32),
        "b3": 0.1 * jax.random.normal(ks[5], (odim,), jnp.float32),
    }
    x = jax.random.normal(ks[6], (B, T, idim), jnp.float32)

    # default path: 2 grid steps, one batch element each
    y = gxl_conv1d_subsampling6(x, params)
    jax.block_until_ready(y)

    y_q = _ref_forward(x, params, quantize=True)     # mirrors kernel's bf16 matmul operands
    y_f = _ref_forward(x, params, quantize=False)    # exact f32 PyTorch-equivalent forward

    T1 = T - 2
    T2 = (T1 - 3) // 2 + 1
    T3 = (T2 - 3) // 3 + 1
    assert y.shape == (B, T3, odim), y.shape

    err_q = float(jnp.max(jnp.abs(y - y_q)))
    err_f = float(jnp.max(jnp.abs(y - y_f)))
    assert err_q < 3e-3, f"mismatch vs bf16-matched reference: {err_q}"
    assert err_f < 1e-1, f"mismatch vs exact f32 reference: {err_f}"

    # also exercise the batch-blocked path (2 elements stacked per grid step)
    y2 = gxl_conv1d_subsampling6(x, params, block_b=2)
    jax.block_until_ready(y2)
    err2 = float(jnp.max(jnp.abs(y2 - y_q)))
    assert err2 < 3e-3, f"batch-blocked path mismatch vs reference: {err2}"

    print("KERNEL_OK")
</pallas_src>

<mosaic_0001>
module attributes {stable_mosaic.version = 11 : i64} {
  func.func @_subsample6_kernel(%arg0: i32, %arg1: memref<1x50x16xf32, #tpu.memory_space<vmem>>, %arg2: memref<48x128xbf16, #tpu.memory_space<vmem>>, %arg3: memref<1x128xf32, #tpu.memory_space<vmem>>, %arg4: memref<384x128xbf16, #tpu.memory_space<vmem>>, %arg5: memref<1x128xf32, #tpu.memory_space<vmem>>, %arg6: memref<384x128xbf16, #tpu.memory_space<vmem>>, %arg7: memref<1x128xf32, #tpu.memory_space<vmem>>, %arg8: memref<8x128xf32, #tpu.memory_space<vmem>>, %arg9: memref<56x128xf32, #tpu.memory_space<vmem>>, %arg10: memref<24x128xf32, #tpu.memory_space<vmem>>) attributes {dimension_semantics = [#tpu.dimension_semantics<parallel>], iteration_bounds = array<i64: 2>, scalar_prefetch = 0 : i64, scratch_operands = 2 : i64, tpu.core_type = #tpu.core_type<tc>, window_params = [{transform_indices = @transform_0, window_bounds = array<i64: 1, 50, 16>}, {pipeline_mode = #tpu.pipeline_mode<synchronous>, transform_indices = @transform_1, window_bounds = array<i64: 48, 128>}, {pipeline_mode = #tpu.pipeline_mode<synchronous>, transform_indices = @transform_2, window_bounds = array<i64: 1, 128>}, {pipeline_mode = #tpu.pipeline_mode<synchronous>, transform_indices = @transform_3, window_bounds = array<i64: 384, 128>}, {pipeline_mode = #tpu.pipeline_mode<synchronous>, transform_indices = @transform_4, window_bounds = array<i64: 1, 128>}, {pipeline_mode = #tpu.pipeline_mode<synchronous>, transform_indices = @transform_5, window_bounds = array<i64: 384, 128>}, {pipeline_mode = #tpu.pipeline_mode<synchronous>, transform_indices = @transform_6, window_bounds = array<i64: 1, 128>}, {transform_indices = @transform_7, window_bounds = array<i64: 8, 128>}]} {
    %c0 = arith.constant 0 : index
    %c0_0 = arith.constant 0 : index
    %c0_1 = arith.constant 0 : index
    %0 = vector.load %arg1[%c0, %c0_0, %c0_1] : memref<1x50x16xf32, #tpu.memory_space<vmem>>, vector<1x48x16xf32>
    %1 = arith.truncf %0 : vector<1x48x16xf32> to vector<1x48x16xbf16>
    %c0_2 = arith.constant 0 : index
    %c1 = arith.constant 1 : index
    %c0_3 = arith.constant 0 : index
    %2 = vector.load %arg1[%c0_2, %c1, %c0_3] : memref<1x50x16xf32, #tpu.memory_space<vmem>>, vector<1x48x16xf32>
    %3 = arith.truncf %2 : vector<1x48x16xf32> to vector<1x48x16xbf16>
    %c0_4 = arith.constant 0 : index
    %c2 = arith.constant 2 : index
    %c0_5 = arith.constant 0 : index
    %4 = vector.load %arg1[%c0_4, %c2, %c0_5] : memref<1x50x16xf32, #tpu.memory_space<vmem>>, vector<1x48x16xf32>
    %5 = arith.truncf %4 : vector<1x48x16xf32> to vector<1x48x16xbf16>
    %6 = tpu.concatenate %1, %3, %5 in 2 : vector<1x48x16xbf16>, vector<1x48x16xbf16>, vector<1x48x16xbf16> -> vector<1x48x48xbf16>
    %7 = vector.shape_cast %6 : vector<1x48x48xbf16> to vector<48x48xbf16>
    %c0_6 = arith.constant 0 : index
    %c0_7 = arith.constant 0 : index
    %8 = vector.load %arg2[%c0_6, %c0_7] : memref<48x128xbf16, #tpu.memory_space<vmem>>, vector<48x128xbf16>
    %cst = arith.constant dense<0.000000e+00> : vector<48x128xf32>
    %9 = tpu.matmul %7, %8, %cst {dimension_numbers = #tpu.dot_dimension_numbers<[1], [0], [0], [1], [0, 0, 1, 1], [], []>} : vector<48x48xbf16>, vector<48x128xbf16>, vector<48x128xf32> -> vector<48x128xf32>
    %c0_8 = arith.constant 0 : index
    %c0_9 = arith.constant 0 : index
    %10 = vector.load %arg3[%c0_8, %c0_9] : memref<1x128xf32, #tpu.memory_space<vmem>>, vector<1x128xf32>
    %11 = vector.broadcast %10 : vector<1x128xf32> to vector<48x128xf32>
    %12 = arith.addf %9, %11 : vector<48x128xf32>
    %cst_10 = arith.constant 5.000000e-01 : f32
    %13 = vector.broadcast %cst_10 : f32 to vector<48x128xf32>
    %14 = arith.mulf %13, %12 : vector<48x128xf32>
    %cst_11 = arith.constant 0.707106769 : f32
    %15 = vector.broadcast %cst_11 : f32 to vector<48x128xf32>
    %16 = arith.mulf %12, %15 : vector<48x128xf32>
    %cst_12 = arith.constant 0.000000e+00 : f32
    %17 = vector.broadcast %cst_12 : f32 to vector<48x128xf32>
    %18 = arith.cmpf oge, %16, %17 : vector<48x128xf32>
    %cst_13 = arith.constant 1.000000e+00 : f32
    %cst_14 = arith.constant -1.000000e+00 : f32
    %19 = vector.broadcast %cst_13 : f32 to vector<48x128xf32>
    %20 = vector.broadcast %cst_14 : f32 to vector<48x128xf32>
    %21 = arith.select %18, %19, %20 : vector<48x128xi1>, vector<48x128xf32>
    %22 = arith.mulf %16, %21 : vector<48x128xf32>
    %cst_15 = arith.constant 0.327591091 : f32
    %23 = vector.broadcast %cst_15 : f32 to vector<48x128xf32>
    %24 = arith.mulf %23, %22 : vector<48x128xf32>
    %cst_16 = arith.constant 1.000000e+00 : f32
    %25 = vector.broadcast %cst_16 : f32 to vector<48x128xf32>
    %26 = arith.addf %25, %24 : vector<48x128xf32>
    %27 = tpu.reciprocal %26 {approx = true} : vector<48x128xf32> -> vector<48x128xf32>
    %28 = arith.mulf %26, %27 : vector<48x128xf32>
    %cst_17 = arith.constant 2.000000e+00 : f32
    %29 = vector.broadcast %cst_17 : f32 to vector<48x128xf32>
    %30 = arith.subf %29, %28 : vector<48x128xf32>
    %31 = arith.mulf %27, %30 : vector<48x128xf32>
    %cst_18 = arith.constant 1.06140542 : f32
    %32 = vector.broadcast %cst_18 : f32 to vector<48x128xf32>
    %33 = arith.mulf %32, %31 : vector<48x128xf32>
    %cst_19 = arith.constant -1.45315206 : f32
    %34 = vector.broadcast %cst_19 : f32 to vector<48x128xf32>
    %35 = arith.addf %33, %34 : vector<48x128xf32>
    %36 = arith.mulf %35, %31 : vector<48x128xf32>
    %cst_20 = arith.constant 1.42141378 : f32
    %37 = vector.broadcast %cst_20 : f32 to vector<48x128xf32>
    %38 = arith.addf %36, %37 : vector<48x128xf32>
    %39 = arith.mulf %38, %31 : vector<48x128xf32>
    %cst_21 = arith.constant -0.284496725 : f32
    %40 = vector.broadcast %cst_21 : f32 to vector<48x128xf32>
    %41 = arith.addf %39, %40 : vector<48x128xf32>
    %42 = arith.mulf %41, %31 : vector<48x128xf32>
    %cst_22 = arith.constant 0.254829586 : f32
    %43 = vector.broadcast %cst_22 : f32 to vector<48x128xf32>
    %44 = arith.addf %42, %43 : vector<48x128xf32>
    %45 = arith.mulf %44, %31 : vector<48x128xf32>
    %cst_23 = arith.constant 0.000000e+00 : f32
    %46 = vector.broadcast %cst_23 : f32 to vector<48x128xf32>
    %47 = arith.subf %46, %22 : vector<48x128xf32>
    %48 = arith.mulf %47, %22 : vector<48x128xf32>
    %49 = math.exp %48 : vector<48x128xf32>
    %50 = arith.mulf %45, %49 : vector<48x128xf32>
    %cst_24 = arith.constant 1.000000e+00 : f32
    %51 = vector.broadcast %cst_24 : f32 to vector<48x128xf32>
    %52 = arith.subf %51, %50 : vector<48x128xf32>
    %53 = arith.mulf %21, %52 : vector<48x128xf32>
    %cst_25 = arith.constant 1.000000e+00 : f32
    %54 = vector.broadcast %cst_25 : f32 to vector<48x128xf32>
    %55 = arith.addf %54, %53 : vector<48x128xf32>
    %56 = arith.mulf %14, %55 : vector<48x128xf32>
    %c0_26 = arith.constant 0 : index
    %c0_27 = arith.constant 0 : index
    %57 = vector.load %arg9[%c0_26, %c0_27] : memref<56x128xf32, #tpu.memory_space<vmem>>, vector<48x128xf32>
    tpu.vector_store %arg9[%c0_26, %c0_27], %56 {strides = array<i32>} : memref<56x128xf32, #tpu.memory_space<vmem>>, vector<48x128xf32>,
    %cst_28 = arith.constant 0.000000e+00 : f32
    %58 = vector.broadcast %cst_28 : f32 to vector<8x128xf32>
    %c48 = arith.constant 48 : index
    %c0_29 = arith.constant 0 : index
    %59 = vector.load %arg9[%c48, %c0_29] : memref<56x128xf32, #tpu.memory_space<vmem>>, vector<8x128xf32>
    tpu.vector_store %arg9[%c48, %c0_29], %58 {strides = array<i32>} : memref<56x128xf32, #tpu.memory_space<vmem>>, vector<8x128xf32>,
    %c0_30 = arith.constant 0 : index
    %c0_31 = arith.constant 0 : index
    %60 = tpu.strided_load %arg9[%c0_30, %c0_31] {strides = array<i32: 2, 1>} : memref<56x128xf32, #tpu.memory_space<vmem>>, vector<24x128xf32>
    %61 = arith.truncf %60 : vector<24x128xf32> to vector<24x128xbf16>
    %c1_32 = arith.constant 1 : index
    %c0_33 = arith.constant 0 : index
    %62 = tpu.strided_load %arg9[%c1_32, %c0_33] {strides = array<i32: 2, 1>} : memref<56x128xf32, #tpu.memory_space<vmem>>, vector<24x128xf32>
    %63 = arith.truncf %62 : vector<24x128xf32> to vector<24x128xbf16>
    %c2_34 = arith.constant 2 : index
    %c0_35 = arith.constant 0 : index
    %64 = tpu.strided_load %arg9[%c2_34, %c0_35] {strides = array<i32: 2, 1>} : memref<56x128xf32, #tpu.memory_space<vmem>>, vector<24x128xf32>
    %65 = arith.truncf %64 : vector<24x128xf32> to vector<24x128xbf16>
    %66 = tpu.concatenate %61, %63, %65 in 1 : vector<24x128xbf16>, vector<24x128xbf16>, vector<24x128xbf16> -> vector<24x384xbf16>
    %c0_36 = arith.constant 0 : index
    %c0_37 = arith.constant 0 : index
    %67 = vector.load %arg4[%c0_36, %c0_37] : memref<384x128xbf16, #tpu.memory_space<vmem>>, vector<384x128xbf16>
    %cst_38 = arith.constant dense<0.000000e+00> : vector<24x128xf32>
    %68 = tpu.matmul %66, %67, %cst_38 {dimension_numbers = #tpu.dot_dimension_numbers<[1], [0], [0], [1], [0, 0, 1, 1], [], []>} : vector<24x384xbf16>, vector<384x128xbf16>, vector<24x128xf32> -> vector<24x128xf32>
    %c0_39 = arith.constant 0 : index
    %c0_40 = arith.constant 0 : index
    %69 = vector.load %arg5[%c0_39, %c0_40] : memref<1x128xf32, #tpu.memory_space<vmem>>, vector<1x128xf32>
    %70 = vector.broadcast %69 : vector<1x128xf32> to vector<24x128xf32>
    %71 = arith.addf %68, %70 : vector<24x128xf32>
    %cst_41 = arith.constant 5.000000e-01 : f32
    %72 = vector.broadcast %cst_41 : f32 to vector<24x128xf32>
    %73 = arith.mulf %72, %71 : vector<24x128xf32>
    %cst_42 = arith.constant 0.707106769 : f32
    %74 = vector.broadcast %cst_42 : f32 to vector<24x128xf32>
    %75 = arith.mulf %71, %74 : vector<24x128xf32>
    %cst_43 = arith.constant 0.000000e+00 : f32
    %76 = vector.broadcast %cst_43 : f32 to vector<24x128xf32>
    %77 = arith.cmpf oge, %75, %76 : vector<24x128xf32>
    %cst_44 = arith.constant 1.000000e+00 : f32
    %cst_45 = arith.constant -1.000000e+00 : f32
    %78 = vector.broadcast %cst_44 : f32 to vector<24x128xf32>
    %79 = vector.broadcast %cst_45 : f32 to vector<24x128xf32>
    %80 = arith.select %77, %78, %79 : vector<24x128xi1>, vector<24x128xf32>
    %81 = arith.mulf %75, %80 : vector<24x128xf32>
    %cst_46 = arith.constant 0.327591091 : f32
    %82 = vector.broadcast %cst_46 : f32 to vector<24x128xf32>
    %83 = arith.mulf %82, %81 : vector<24x128xf32>
    %cst_47 = arith.constant 1.000000e+00 : f32
    %84 = vector.broadcast %cst_47 : f32 to vector<24x128xf32>
    %85 = arith.addf %84, %83 : vector<24x128xf32>
    %86 = tpu.reciprocal %85 {approx = true} : vector<24x128xf32> -> vector<24x128xf32>
    %87 = arith.mulf %85, %86 : vector<24x128xf32>
    %cst_48 = arith.constant 2.000000e+00 : f32
    %88 = vector.broadcast %cst_48 : f32 to vector<24x128xf32>
    %89 = arith.subf %88, %87 : vector<24x128xf32>
    %90 = arith.mulf %86, %89 : vector<24x128xf32>
    %cst_49 = arith.constant 1.06140542 : f32
    %91 = vector.broadcast %cst_49 : f32 to vector<24x128xf32>
    %92 = arith.mulf %91, %90 : vector<24x128xf32>
    %cst_50 = arith.constant -1.45315206 : f32
    %93 = vector.broadcast %cst_50 : f32 to vector<24x128xf32>
    %94 = arith.addf %92, %93 : vector<24x128xf32>
    %95 = arith.mulf %94, %90 : vector<24x128xf32>
    %cst_51 = arith.constant 1.42141378 : f32
    %96 = vector.broadcast %cst_51 : f32 to vector<24x128xf32>
    %97 = arith.addf %95, %96 : vector<24x128xf32>
    %98 = arith.mulf %97, %90 : vector<24x128xf32>
    %cst_52 = arith.constant -0.284496725 : f32
    %99 = vector.broadcast %cst_52 : f32 to vector<24x128xf32>
    %100 = arith.addf %98, %99 : vector<24x128xf32>
    %101 = arith.mulf %100, %90 : vector<24x128xf32>
    %cst_53 = arith.constant 0.254829586 : f32
    %102 = vector.broadcast %cst_53 : f32 to vector<24x128xf32>
    %103 = arith.addf %101, %102 : vector<24x128xf32>
    %104 = arith.mulf %103, %90 : vector<24x128xf32>
    %cst_54 = arith.constant 0.000000e+00 : f32
    %105 = vector.broadcast %cst_54 : f32 to vector<24x128xf32>
    %106 = arith.subf %105, %81 : vector<24x128xf32>
    %107 = arith.mulf %106, %81 : vector<24x128xf32>
    %108 = math.exp %107 : vector<24x128xf32>
    %109 = arith.mulf %104, %108 : vector<24x128xf32>
    %cst_55 = arith.constant 1.000000e+00 : f32
    %110 = vector.broadcast %cst_55 : f32 to vector<24x128xf32>
    %111 = arith.subf %110, %109 : vector<24x128xf32>
    %112 = arith.mulf %80, %111 : vector<24x128xf32>
    %cst_56 = arith.constant 1.000000e+00 : f32
    %113 = vector.broadcast %cst_56 : f32 to vector<24x128xf32>
    %114 = arith.addf %113, %112 : vector<24x128xf32>
    %115 = arith.mulf %73, %114 : vector<24x128xf32>
    %c0_57 = arith.constant 0 : index
    %c0_58 = arith.constant 0 : index
    %116 = vector.load %arg10[%c0_57, %c0_58] : memref<24x128xf32, #tpu.memory_space<vmem>>, vector<24x128xf32>
    tpu.vector_store %arg10[%c0_57, %c0_58], %115 {strides = array<i32>} : memref<24x128xf32, #tpu.memory_space<vmem>>, vector<24x128xf32>,
    %c0_59 = arith.constant 0 : index
    %c0_60 = arith.constant 0 : index
    %117 = tpu.strided_load %arg10[%c0_59, %c0_60] {strides = array<i32: 3, 1>} : memref<24x128xf32, #tpu.memory_space<vmem>>, vector<8x128xf32>
    %118 = arith.truncf %117 : vector<8x128xf32> to vector<8x128xbf16>
    %c1_61 = arith.constant 1 : index
    %c0_62 = arith.constant 0 : index
    %119 = tpu.strided_load %arg10[%c1_61, %c0_62] {strides = array<i32: 3, 1>} : memref<24x128xf32, #tpu.memory_space<vmem>>, vector<8x128xf32>
    %120 = arith.truncf %119 : vector<8x128xf32> to vector<8x128xbf16>
    %c2_63 = arith.constant 2 : index
    %c0_64 = arith.constant 0 : index
    %121 = tpu.strided_load %arg10[%c2_63, %c0_64] {strides = array<i32: 3, 1>} : memref<24x128xf32, #tpu.memory_space<vmem>>, vector<8x128xf32>
    %122 = arith.truncf %121 : vector<8x128xf32> to vector<8x128xbf16>
    %123 = tpu.concatenate %118, %120, %122 in 1 : vector<8x128xbf16>, vector<8x128xbf16>, vector<8x128xbf16> -> vector<8x384xbf16>
    %c0_65 = arith.constant 0 : index
    %c0_66 = arith.constant 0 : index
    %124 = vector.load %arg6[%c0_65, %c0_66] : memref<384x128xbf16, #tpu.memory_space<vmem>>, vector<384x128xbf16>
    %cst_67 = arith.constant dense<0.000000e+00> : vector<8x128xf32>
    %125 = tpu.matmul %123, %124, %cst_67 {dimension_numbers = #tpu.dot_dimension_numbers<[1], [0], [0], [1], [0, 0, 1, 1], [], []>} : vector<8x384xbf16>, vector<384x128xbf16>, vector<8x128xf32> -> vector<8x128xf32>
    %c0_68 = arith.constant 0 : index
    %c0_69 = arith.constant 0 : index
    %126 = vector.load %arg7[%c0_68, %c0_69] : memref<1x128xf32, #tpu.memory_space<vmem>>, vector<1x128xf32>
    %127 = vector.broadcast %126 : vector<1x128xf32> to vector<8x128xf32>
    %128 = arith.addf %125, %127 : vector<8x128xf32>
    %cst_70 = arith.constant 5.000000e-01 : f32
    %129 = vector.broadcast %cst_70 : f32 to vector<8x128xf32>
    %130 = arith.mulf %129, %128 : vector<8x128xf32>
    %cst_71 = arith.constant 0.707106769 : f32
    %131 = vector.broadcast %cst_71 : f32 to vector<8x128xf32>
    %132 = arith.mulf %128, %131 : vector<8x128xf32>
    %cst_72 = arith.constant 0.000000e+00 : f32
    %133 = vector.broadcast %cst_72 : f32 to vector<8x128xf32>
    %134 = arith.cmpf oge, %132, %133 : vector<8x128xf32>
    %cst_73 = arith.constant 1.000000e+00 : f32
    %cst_74 = arith.constant -1.000000e+00 : f32
    %135 = vector.broadcast %cst_73 : f32 to vector<8x128xf32>
    %136 = vector.broadcast %cst_74 : f32 to vector<8x128xf32>
    %137 = arith.select %134, %135, %136 : vector<8x128xi1>, vector<8x128xf32>
    %138 = arith.mulf %132, %137 : vector<8x128xf32>
    %cst_75 = arith.constant 0.327591091 : f32
    %139 = vector.broadcast %cst_75 : f32 to vector<8x128xf32>
    %140 = arith.mulf %139, %138 : vector<8x128xf32>
    %cst_76 = arith.constant 1.000000e+00 : f32
    %141 = vector.broadcast %cst_76 : f32 to vector<8x128xf32>
    %142 = arith.addf %141, %140 : vector<8x128xf32>
    %143 = tpu.reciprocal %142 {approx = true} : vector<8x128xf32> -> vector<8x128xf32>
    %144 = arith.mulf %142, %143 : vector<8x128xf32>
    %cst_77 = arith.constant 2.000000e+00 : f32
    %145 = vector.broadcast %cst_77 : f32 to vector<8x128xf32>
    %146 = arith.subf %145, %144 : vector<8x128xf32>
    %147 = arith.mulf %143, %146 : vector<8x128xf32>
    %cst_78 = arith.constant 1.06140542 : f32
    %148 = vector.broadcast %cst_78 : f32 to vector<8x128xf32>
    %149 = arith.mulf %148, %147 : vector<8x128xf32>
    %cst_79 = arith.constant -1.45315206 : f32
    %150 = vector.broadcast %cst_79 : f32 to vector<8x128xf32>
    %151 = arith.addf %149, %150 : vector<8x128xf32>
    %152 = arith.mulf %151, %147 : vector<8x128xf32>
    %cst_80 = arith.constant 1.42141378 : f32
    %153 = vector.broadcast %cst_80 : f32 to vector<8x128xf32>
    %154 = arith.addf %152, %153 : vector<8x128xf32>
    %155 = arith.mulf %154, %147 : vector<8x128xf32>
    %cst_81 = arith.constant -0.284496725 : f32
    %156 = vector.broadcast %cst_81 : f32 to vector<8x128xf32>
    %157 = arith.addf %155, %156 : vector<8x128xf32>
    %158 = arith.mulf %157, %147 : vector<8x128xf32>
    %cst_82 = arith.constant 0.254829586 : f32
    %159 = vector.broadcast %cst_82 : f32 to vector<8x128xf32>
    %160 = arith.addf %158, %159 : vector<8x128xf32>
    %161 = arith.mulf %160, %147 : vector<8x128xf32>
    %cst_83 = arith.constant 0.000000e+00 : f32
    %162 = vector.broadcast %cst_83 : f32 to vector<8x128xf32>
    %163 = arith.subf %162, %138 : vector<8x128xf32>
    %164 = arith.mulf %163, %138 : vector<8x128xf32>
    %165 = math.exp %164 : vector<8x128xf32>
    %166 = arith.mulf %161, %165 : vector<8x128xf32>
    %cst_84 = arith.constant 1.000000e+00 : f32
    %167 = vector.broadcast %cst_84 : f32 to vector<8x128xf32>
    %168 = arith.subf %167, %166 : vector<8x128xf32>
    %169 = arith.mulf %137, %168 : vector<8x128xf32>
    %cst_85 = arith.constant 1.000000e+00 : f32
    %170 = vector.broadcast %cst_85 : f32 to vector<8x128xf32>
    %171 = arith.addf %170, %169 : vector<8x128xf32>
    %172 = arith.mulf %130, %171 : vector<8x128xf32>
    %c0_86 = arith.constant 0 : index
    %c0_87 = arith.constant 0 : index
    %173 = vector.load %arg8[%c0_86, %c0_87] : memref<8x128xf32, #tpu.memory_space<vmem>>, vector<8x128xf32>
    tpu.vector_store %arg8[%c0_86, %c0_87], %172 {strides = array<i32>} : memref<8x128xf32, #tpu.memory_space<vmem>>, vector<8x128xf32>,
    return
  }
  func.func @transform_0(%arg0: i32) -> (i32, i32, i32) {
    %c0_i32 = arith.constant 0 : i32
    %c0_i32_0 = arith.constant 0 : i32
    %c0_i32_1 = arith.constant 0 : i32
    return %arg0, %c0_i32, %c0_i32_0 : i32, i32, i32
  }
  func.func @transform_1(%arg0: i32) -> (i32, i32) {
    %c0_i32 = arith.constant 0 : i32
    %c0_i32_0 = arith.constant 0 : i32
    %c0_i32_1 = arith.constant 0 : i32
    return %c0_i32, %c0_i32_0 : i32, i32
  }
  func.func @transform_2(%arg0: i32) -> (i32, i32) {
    %c0_i32 = arith.constant 0 : i32
    %c0_i32_0 = arith.constant 0 : i32
    %c0_i32_1 = arith.constant 0 : i32
    return %c0_i32, %c0_i32_0 : i32, i32
  }
  func.func @transform_3(%arg0: i32) -> (i32, i32) {
    %c0_i32 = arith.constant 0 : i32
    %c0_i32_0 = arith.constant 0 : i32
    %c0_i32_1 = arith.constant 0 : i32
    return %c0_i32, %c0_i32_0 : i32, i32
  }
  func.func @transform_4(%arg0: i32) -> (i32, i32) {
    %c0_i32 = arith.constant 0 : i32
    %c0_i32_0 = arith.constant 0 : i32
    %c0_i32_1 = arith.constant 0 : i32
    return %c0_i32, %c0_i32_0 : i32, i32
  }
  func.func @transform_5(%arg0: i32) -> (i32, i32) {
    %c0_i32 = arith.constant 0 : i32
    %c0_i32_0 = arith.constant 0 : i32
    %c0_i32_1 = arith.constant 0 : i32
    return %c0_i32, %c0_i32_0 : i32, i32
  }
  func.func @transform_6(%arg0: i32) -> (i32, i32) {
    %c0_i32 = arith.constant 0 : i32
    %c0_i32_0 = arith.constant 0 : i32
    %c0_i32_1 = arith.constant 0 : i32
    return %c0_i32, %c0_i32_0 : i32, i32
  }
  func.func @transform_7(%arg0: i32) -> (i32, i32) {
    %c0_i32 = arith.constant 0 : i32
    %c0_i32_0 = arith.constant 0 : i32
    return %arg0, %c0_i32 : i32, i32
  }
}

</mosaic_0001>

<llo_original>
// kernel: tpu_custom_call.1
$region0: #{tpu_custom_call.1}
  #allocation0 [shape = 'u32[]', space=smem, size = 0x4, offset = 0x4, fixed_abs, tag = 'smem constant byte address 0x4 - core index']
  #allocation1 [shape = 'u32[144,128]{1,0:T(1,128)}', space=vmem, size = 0x12000, scoped, tag = 'internal scratch']
  #allocation2 [shape = 'f32[56,128]{1,0:T(8,128)}', space=vmem, size = 0x7000, scoped, tag = 'scratch operand']
  #allocation3 [shape = 'f32[24,128]{1,0:T(8,128)}', space=vmem, size = 0x3000, scoped, tag = 'scratch operand']
  %s0 = inlined_call_operand.vmem [shape: f32[2,50,16], index: 0, kind: input, shape index: {}]
  %s1 = inlined_call_operand.vmem [shape: bf16[48,128], index: 1, kind: input, shape index: {}]
  %s2 = inlined_call_operand.vmem [shape: f32[1,128], index: 2, kind: input, shape index: {}]
  %s3 = inlined_call_operand.hbm [shape: bf16[384,128], index: 3, kind: input, shape index: {}]
  %s4 = inlined_call_operand.vmem [shape: f32[1,128], index: 4, kind: input, shape index: {}]
  %s5 = inlined_call_operand.hbm [shape: bf16[384,128], index: 5, kind: input, shape index: {}]
  %s6 = inlined_call_operand.vmem [shape: f32[1,128], index: 6, kind: input, shape index: {}]
  %s7 = inlined_call_operand.hbm [shape: f32[16,128], index: 7, kind: output, shape index: {}]
  %s8 = sld [smem:[#allocation0]]
  $region69: #{tpu_custom_call.1} parent=0
    _
  %s10 = ssub.s32 1, %s8
  %s11 = scalar_select 0, %s10, %s8
  $region1: #{tpu_custom_call.1} parent=0
    #allocation4 [shape = 'u8[98304]{0}', space=vmem, size = 0x18000, scoped, tag = 'input window, operand 3, single buffered']
    #allocation5 [shape = 's32[2]{0}', space=sflag, size = 0x8, scoped, tag = 'scoped memory for tpu_custom_call.1']
    #allocation6 [shape = 's32[2]{0}', space=sflag, size = 0x8, scoped, tag = 'scoped memory for tpu_custom_call.1']
    #allocation7 [shape = 'u8[98304]{0}', space=vmem, size = 0x18000, scoped, tag = 'input window, operand 5, single buffered']
    #allocation8 [shape = 's32[1]{0}', space=sflag, size = 0x4, scoped, tag = 'scoped memory for tpu_custom_call.1']
    #allocation9 [shape = 'u8[8192]{0}', space=vmem, size = 0x2000, scoped, tag = 'output window, operand 0']
    %12 = vsyncpa [#allocation5], 0
    %13 = vsyncpa [#allocation8], 0
    %14 = vsyncpa [#allocation6], 0
    %s15 = scalar_lea.sflag [#allocation6], 1
    %16 = vsyncpa %s15, 0
    loop: start=0, step=1, limit=4
    $region2: #{tpu_custom_call.1} parent=1 // loop_pre_header
      _
    $region3: #{tpu_custom_call.1} parent=1 // loop_header
      %s18 = sphi 0, %s22
      %p19 = scmp.ge.s32.totalorder %s18, 4
      %s28 = sphi 0, %s30
      %s31 = sphi 0, %s28
      %s32 = sphi 0, %s31
      %s48 = sphi 0, %s32
      %s52 = sphi 0, %s52
      %s54 = sphi 0, %s52
      %s55 = sphi 0, %s54
      %s69 = sphi 0, %s55
      %s73 = sphi 0, %s73
      %s75 = sphi 0, %s73
      %s76 = sphi 0, %s75
      %s90 = sphi 0, %s76
      %s94 = sphi 0, %s94
      %s96 = sphi 0, %s94
      %s97 = sphi 0, %s96
      %s111 = sphi 0, %s97
      %s115 = sphi 0, %s115
      %s117 = sphi 0, %s115
      %s118 = sphi 0, %s117
      %s132 = sphi 0, %s118
      %s136 = sphi 0, %s136
      %s138 = sphi 0, %s136
      %s139 = sphi 0, %s138
      %s153 = sphi 0, %s139
      %s157 = sphi 0, %s157
      %s159 = sphi 0, %s157
      %s160 = sphi 0, %s159
      %s174 = sphi 0, %s160
      %s180 = sphi 0, %s182
      %s183 = sphi 0, %s180
      %s184 = sphi 0, %s183
      %s200 = sphi 0, %s184
    $region4: #{tpu_custom_call.1} parent=1 // loop_header_branch
      %21 = sbr.rel (%p19) target = $region8
    $region5: #{tpu_custom_call.1} parent=1 // loop_body
      %s23 = ssub.s32 %s18, 1
      %s24 = ssub.s32 %s18, 2
      %s25 = sadd.s32 %s18, 1
      %s26 = ssub.s32 %s18, %s25
      %p27 = scmp.eq.s32.totalorder %s26, 0
      %s29 = sadd.s32 %s28, 1
      %s30 = scalar_select %p27, %s28, %s29
      %p33 = pneg %p27
      %p34 = scmp.eq.s32.totalorder %s18, 1
      %p35 = por %p33, %p34
      %p36 = scmp.ne.s32.totalorder %s28, %s31
      %p37 = scmp.eq.s32.totalorder %s18, 0
      %p38 = por %p36, %p37
      %p39 = scmp.ne.s32.totalorder %s28, %s31
      %p40 = scmp.eq.s32.totalorder %s23, 1
      %p41 = por %p39, %p40
      %p42 = scmp.ne.s32.totalorder %s31, %s32
      %p43 = scmp.eq.s32.totalorder %s23, 0
      %p44 = por %p42, %p43
      %p45 = scmp.ne.s32.totalorder %s31, %s32
      %p46 = scmp.eq.s32.totalorder %s24, 1
      %p47 = por %p45, %p46
      %p49 = scmp.ne.s32.totalorder %s32, %s48
      %p50 = scmp.eq.s32.totalorder %s24, 0
      %p51 = por %p49, %p50
      %s53 = sadd.s32 %s52, 1
      %p56 = scmp.eq.s32.totalorder %s18, 1
      %p57 = scmp.ne.s32.totalorder %s52, %s54
      %p58 = scmp.eq.s32.totalorder %s18, 0
      %p59 = por %p57, %p58
      %p60 = scmp.ne.s32.totalorder %s52, %s54
      %p61 = scmp.eq.s32.totalorder %s23, 1
      %p62 = por %p60, %p61
      %p63 = scmp.ne.s32.totalorder %s54, %s55
      %p64 = scmp.eq.s32.totalorder %s23, 0
      %p65 = por %p63, %p64
      %p66 = scmp.ne.s32.totalorder %s54, %s55
      %p67 = scmp.eq.s32.totalorder %s24, 1
      %p68 = por %p66, %p67
      %p70 = scmp.ne.s32.totalorder %s55, %s69
      %p71 = scmp.eq.s32.totalorder %s24, 0
      %p72 = por %p70, %p71
      %s74 = sadd.s32 %s73, 1
      %p77 = scmp.eq.s32.totalorder %s18, 1
      %p78 = scmp.ne.s32.totalorder %s73, %s75
      %p79 = scmp.eq.s32.totalorder %s18, 0
      %p80 = por %p78, %p79
      %p81 = scmp.ne.s32.totalorder %s73, %s75
      %p82 = scmp.eq.s32.totalorder %s23, 1
      %p83 = por %p81, %p82
      %p84 = scmp.ne.s32.totalorder %s75, %s76
      %p85 = scmp.eq.s32.totalorder %s23, 0
      %p86 = por %p84, %p85
      %p87 = scmp.ne.s32.totalorder %s75, %s76
      %p88 = scmp.eq.s32.totalorder %s24, 1
      %p89 = por %p87, %p88
      %p91 = scmp.ne.s32.totalorder %s76, %s90
      %p92 = scmp.eq.s32.totalorder %s24, 0
      %p93 = por %p91, %p92
      %s95 = sadd.s32 %s94, 1
      %p98 = scmp.eq.s32.totalorder %s18, 1
      %p99 = scmp.ne.s32.totalorder %s94, %s96
      %p100 = scmp.eq.s32.totalorder %s18, 0
      %p101 = por %p99, %p100
      %p102 = scmp.ne.s32.totalorder %s94, %s96
      %p103 = scmp.eq.s32.totalorder %s23, 1
      %p104 = por %p102, %p103
      %p105 = scmp.ne.s32.totalorder %s96, %s97
      %p106 = scmp.eq.s32.totalorder %s23, 0
      %p107 = por %p105, %p106
      %p108 = scmp.ne.s32.totalorder %s96, %s97
      %p109 = scmp.eq.s32.totalorder %s24, 1
      %p110 = por %p108, %p109
      %p112 = scmp.ne.s32.totalorder %s97, %s111
      %p113 = scmp.eq.s32.totalorder %s24, 0
      %p114 = por %p112, %p113
      %s116 = sadd.s32 %s115, 1
      %p119 = scmp.eq.s32.totalorder %s18, 1
      %p120 = scmp.ne.s32.totalorder %s115, %s117
      %p121 = scmp.eq.s32.totalorder %s18, 0
      %p122 = por %p120, %p121
      %p123 = scmp.ne.s32.totalorder %s115, %s117
      %p124 = scmp.eq.s32.totalorder %s23, 1
      %p125 = por %p123, %p124
      %p126 = scmp.ne.s32.totalorder %s117, %s118
      %p127 = scmp.eq.s32.totalorder %s23, 0
      %p128 = por %p126, %p127
      %p129 = scmp.ne.s32.totalorder %s117, %s118
      %p130 = scmp.eq.s32.totalorder %s24, 1
      %p131 = por %p129, %p130
      %p133 = scmp.ne.s32.totalorder %s118, %s132
      %p134 = scmp.eq.s32.totalorder %s24, 0
      %p135 = por %p133, %p134
      %s137 = sadd.s32 %s136, 1
      %p140 = scmp.eq.s32.totalorder %s18, 1
      %p141 = scmp.ne.s32.totalorder %s136, %s138
      %p142 = scmp.eq.s32.totalorder %s18, 0
      %p143 = por %p141, %p142
      %p144 = scmp.ne.s32.totalorder %s136, %s138
      %p145 = scmp.eq.s32.totalorder %s23, 1
      %p146 = por %p144, %p145
      %p147 = scmp.ne.s32.totalorder %s138, %s139
      %p148 = scmp.eq.s32.totalorder %s23, 0
      %p149 = por %p147, %p148
      %p150 = scmp.ne.s32.totalorder %s138, %s139
      %p151 = scmp.eq.s32.totalorder %s24, 1
      %p152 = por %p150, %p151
      %p154 = scmp.ne.s32.totalorder %s139, %s153
      %p155 = scmp.eq.s32.totalorder %s24, 0
      %p156 = por %p154, %p155
      %s158 = sadd.s32 %s157, 1
      %p161 = scmp.eq.s32.totalorder %s18, 1
      %p162 = scmp.ne.s32.totalorder %s157, %s159
      %p163 = scmp.eq.s32.totalorder %s18, 0
      %p164 = por %p162, %p163
      %p165 = scmp.ne.s32.totalorder %s157, %s159
      %p166 = scmp.eq.s32.totalorder %s23, 1
      %p167 = por %p165, %p166
      %p168 = scmp.ne.s32.totalorder %s159, %s160
      %p169 = scmp.eq.s32.totalorder %s23, 0
      %p170 = por %p168, %p169
      %p171 = scmp.ne.s32.totalorder %s159, %s160
      %p172 = scmp.eq.s32.totalorder %s24, 1
      %p173 = por %p171, %p172
      %p175 = scmp.ne.s32.totalorder %s160, %s174
      %p176 = scmp.eq.s32.totalorder %s24, 0
      %p177 = por %p175, %p176
      %s178 = ssub.s32 %s18, %s25
      %p179 = scmp.eq.s32.totalorder %s178, 0
      %s181 = sadd.s32 %s180, 1
      %s182 = scalar_select %p179, %s180, %s181
      %p185 = pneg %p179
      %p186 = scmp.eq.s32.totalorder %s18, 1
      %p187 = por %p185, %p186
      %p188 = scmp.ne.s32.totalorder %s180, %s183
      %p189 = scmp.eq.s32.totalorder %s18, 0
      %p190 = por %p188, %p189
      %p191 = scmp.ne.s32.totalorder %s180, %s183
      %p192 = scmp.eq.s32.totalorder %s23, 1
      %p193 = por %p191, %p192
      %p194 = scmp.ne.s32.totalorder %s183, %s184
      %p195 = scmp.eq.s32.totalorder %s23, 0
      %p196 = por %p194, %p195
      %p197 = scmp.ne.s32.totalorder %s183, %s184
      %p198 = scmp.eq.s32.totalorder %s24, 1
      %p199 = por %p197, %p198
      %p201 = scmp.ne.s32.totalorder %s184, %s200
      %p202 = scmp.eq.s32.totalorder %s24, 0
      %p203 = por %p201, %p202
      %p204 = scmp.le.s32.totalorder 1, %s18
      %p205 = scmp.lt.s32.totalorder %s18, 3
      %p206 = pnand %p204, %p205
      %p207 = pneg %p206
      // Predicated region
      $region9: #{tpu_custom_call.1} parent=5 // pred_check
        _
      $region10: #{tpu_custom_call.1} parent=5 // pred_check_branch
        %209 = sbr.rel (%p206) target = $region12
      $region11: #{tpu_custom_call.1} parent=5 // pred_region
        %s210 = ssub.s32 %s18, 1
        // Predicated region
        $region13: #{tpu_custom_call.1} parent=11 // pred_check
          %p211 = pneg %p65
        $region14: #{tpu_custom_call.1} parent=11 // pred_check_branch
          %213 = sbr.rel (%p211) target = $region16
        $region15: #{tpu_custom_call.1} parent=11 // pred_region
          _
        $region16: #{tpu_custom_call.1} parent=11 // pred_fallthru
          _
        // Predicated region
        $region17: #{tpu_custom_call.1} parent=11 // pred_check
          %p214 = pneg %p86
        $region18: #{tpu_custom_call.1} parent=11 // pred_check_branch
          %216 = sbr.rel (%p214) target = $region20
        $region19: #{tpu_custom_call.1} parent=11 // pred_region
          _
        $region20: #{tpu_custom_call.1} parent=11 // pred_fallthru
          _
        // Predicated region
        $region21: #{tpu_custom_call.1} parent=11 // pred_check
          %p217 = pneg %p107
        $region22: #{tpu_custom_call.1} parent=11 // pred_check_branch
          %219 = sbr.rel (%p217) target = $region24
        $region23: #{tpu_custom_call.1} parent=11 // pred_region
          %s221 = ssub.s32 3072, 3072
          %222 = vsyncadd [#allocation5], %s221
          %s223 = sshll.u32 [#allocation4], 4
          %s224 = int_to_ptr.vmem [resolvable:$true] %s223
          %229 = dma.hbm_to_vmem [thread:$0]  %s3, 3072, %s224, [#allocation5], 64, 64, 4
        $region24: #{tpu_custom_call.1} parent=11 // pred_fallthru
          _
        // Predicated region
        $region25: #{tpu_custom_call.1} parent=11 // pred_check
          %p230 = pneg %p128
        $region26: #{tpu_custom_call.1} parent=11 // pred_check_branch
          %232 = sbr.rel (%p230) target = $region28
        $region27: #{tpu_custom_call.1} parent=11 // pred_region
          _
        $region28: #{tpu_custom_call.1} parent=11 // pred_fallthru
          _
        // Predicated region
        $region29: #{tpu_custom_call.1} parent=11 // pred_check
          %p233 = pneg %p149
        $region30: #{tpu_custom_call.1} parent=11 // pred_check_branch
          %235 = sbr.rel (%p233) target = $region32
        $region31: #{tpu_custom_call.1} parent=11 // pred_region
          %s237 = ssub.s32 3072, 3072
          %238 = vsyncadd [#allocation8], %s237
          %s239 = sshll.u32 [#allocation7], 4
          %s240 = int_to_ptr.vmem [resolvable:$true] %s239
          %245 = dma.hbm_to_vmem [thread:$0]  %s5, 3072, %s240, [#allocation8], 64, 64, 4
        $region32: #{tpu_custom_call.1} parent=11 // pred_fallthru
          _
        // Predicated region
        $region33: #{tpu_custom_call.1} parent=11 // pred_check
          %p246 = pneg %p170
        $region34: #{tpu_custom_call.1} parent=11 // pred_check_branch
          %248 = sbr.rel (%p246) target = $region36
        $region35: #{tpu_custom_call.1} parent=11 // pred_region
          _
        $region36: #{tpu_custom_call.1} parent=11 // pred_fallthru
          _
      $region12: #{tpu_custom_call.1} parent=5 // pred_fallthru
        _
      %p249 = scmp.lt.s32.totalorder %s18, 2
      // Predicated region
      $region37: #{tpu_custom_call.1} parent=5 // pred_check
        %p250 = pneg %p249
      $region38: #{tpu_custom_call.1} parent=5 // pred_check_branch
        %252 = sbr.rel (%p250) target = $region40
      $region39: #{tpu_custom_call.1} parent=5 // pred_region
        // Predicated region
        $region41: #{tpu_custom_call.1} parent=39 // pred_check
          %p253 = pneg %p38
        $region42: #{tpu_custom_call.1} parent=39 // pred_check_branch
          %255 = sbr.rel (%p253) target = $region44
        $region43: #{tpu_custom_call.1} parent=39 // pred_region
          %p256 = scmp.lt.s32.totalorder %s18, 1
          %s257 = scalar_select %p256, %s18, 1
          %s258 = smul.addr %s257, 7
          %s259 = smul.addr %s258, 8
          %s260 = scalar_lea.vmem %s0, %s259
        $region44: #{tpu_custom_call.1} parent=39 // pred_fallthru
          _
      $region40: #{tpu_custom_call.1} parent=5 // pred_fallthru
        _
      %p261 = scmp.le.s32.totalorder 1, %s18
      %p262 = scmp.lt.s32.totalorder %s18, 3
      %p263 = pnand %p261, %p262
      %p264 = pneg %p263
      // Predicated region
      $region45: #{tpu_custom_call.1} parent=5 // pred_check
        _
      $region46: #{tpu_custom_call.1} parent=5 // pred_check_branch
        %266 = sbr.rel (%p263) target = $region48
      $region47: #{tpu_custom_call.1} parent=5 // pred_region
        %s267 = ssub.s32 %s18, 1
        // Predicated region
        $region49: #{tpu_custom_call.1} parent=47 // pred_check
          %p268 = pneg %p107
        $region50: #{tpu_custom_call.1} parent=47 // pred_check_branch
          %270 = sbr.rel (%p268) target = $region52
        $region51: #{tpu_custom_call.1} parent=47 // pred_region
          %271 = dma.done [#allocation5], 3072
        $region52: #{tpu_custom_call.1} parent=47 // pred_fallthru
          _
        // Predicated region
        $region53: #{tpu_custom_call.1} parent=47 // pred_check
          %p272 = pneg %p149
        $region54: #{tpu_custom_call.1} parent=47 // pred_check_branch
          %274 = sbr.rel (%p272) target = $region56
        $region55: #{tpu_custom_call.1} parent=47 // pred_region
          %275 = dma.done [#allocation8], 3072
        $region56: #{tpu_custom_call.1} parent=47 // pred_fallthru
          _
        %p276 = scmp.lt.s32.totalorder %s23, 1
        %s277 = scalar_select %p276, %s23, 1
        %s278 = smul.addr %s277, 7
        %s279 = smul.addr %s278, 8
        %s280 = scalar_lea.vmem %s0, %s279
        %p281 = pneg %p44
        %p282 = pneg %p41
        %p283 = pneg %p65
        %p284 = pneg %p62
        %p285 = pneg %p86
        %p286 = pneg %p83
        %p287 = pneg %p107
        %p288 = pneg %p104
        %p289 = pneg %p128
        %p290 = pneg %p125
        %p291 = pneg %p149
        %p292 = pneg %p146
        %p293 = pneg %p170
        %p294 = pneg %p167
        %p295 = pneg %p196
        %p296 = pneg %p193
        %s297 = sand.u32 %s183, 1
        %s298 = scalar_lea.sflag [#allocation6], %s297
        %s299 = sand.u32 %s183, 1
        %s300 = smul.addr %s299, 8
        %s301 = scalar_lea.vmem [#allocation9], %s300
        %p302 = scmp.lt.s32.totalorder %s23, 1
        %s303 = scalar_select %p302, %s23, 1
        %s304 = smul.addr %s303, 7
        %s305 = smul.addr %s304, 8
        %s306 = scalar_lea.vmem %s0, %s305
        %v308 = vld [vmem:[%s306] sm:$0xff]
        %v309 = vld [vmem:[%s306 + $0x8] sm:$0xff]
        %v310 = vld [vmem:[%s306 + $0x10] sm:$0xff]
        %v311 = vld [vmem:[%s306 + $0x18] sm:$0xff]
        %v312 = vld [vmem:[%s306 + $0x20] sm:$0xff]
        %v313 = vld [vmem:[%s306 + $0x28] sm:$0xff]
        %v314 = vpack.c.bf16 %v309, %v308
        %v315 = vpack.c.bf16 %v311, %v310
        %v316 = vpack.c.bf16 %v313, %v312
        %v317 = vld [vmem:[%s306 + $0x1] sm:$0xff]
        %v318 = vld [vmem:[%s306 + $0x9] sm:$0xff]
        %v319 = vld [vmem:[%s306 + $0x11] sm:$0xff]
        %v320 = vld [vmem:[%s306 + $0x19] sm:$0xff]
        %v321 = vld [vmem:[%s306 + $0x21] sm:$0xff]
        %v322 = vld [vmem:[%s306 + $0x29] sm:$0xff]
        %v323 = vpack.c.bf16 %v318, %v317
        %v324 = vpack.c.bf16 %v320, %v319
        %v325 = vpack.c.bf16 %v322, %v321
        %v326 = vld [vmem:[%s306 + $0x2] sm:$0xff]
        %v327 = vld [vmem:[%s306 + $0xa] sm:$0xff]
        %v328 = vld [vmem:[%s306 + $0x12] sm:$0xff]
        %v329 = vld [vmem:[%s306 + $0x1a] sm:$0xff]
        %v330 = vld [vmem:[%s306 + $0x22] sm:$0xff]
        %v331 = vld [vmem:[%s306 + $0x2a] sm:$0xff]
        %v332 = vpack.c.bf16 %v327, %v326
        %v333 = vpack.c.bf16 %v329, %v328
        %v334 = vpack.c.bf16 %v331, %v330
        %338 = vrot.lane.b32.xlu0 %v323, 16
        %v339 = vpop.permute.xlu0 %338
        %340 = vrot.lane.b32.xlu0 %v324, 16
        %v341 = vpop.permute.xlu0 %340
        %342 = vrot.lane.b32.xlu0 %v325, 16
        %v343 = vpop.permute.xlu0 %342
        %347 = vrot.lane.b32.xlu0 %v332, 32
        %v348 = vpop.permute.xlu0 %347
        %349 = vrot.lane.b32.xlu0 %v333, 32
        %v350 = vpop.permute.xlu0 %349
        %351 = vrot.lane.b32.xlu0 %v334, 32
        %v352 = vpop.permute.xlu0 %351
        %vm353 = vcmask 130048
        %v356 = vsel %vm353, %v314, %v339
        %v359 = vsel %vm353, %v315, %v341
        %v362 = vsel %vm353, %v316, %v343
        %vm363 = vcmask 261120
        %v365 = vsel %vm363, %v356, %v348
        %v367 = vsel %vm363, %v359, %v350
        %v369 = vsel %vm363, %v362, %v352
        %v370 = vld [vmem:[%s1] sm:$0xf]
        %v371 = vld [vmem:[%s1 + $0x4] sm:$0xf]
        %v372 = vld [vmem:[%s1 + $0x8] sm:$0xf]
        %v373 = vld [vmem:[%s1 + $0xc] sm:$0xf]
        %v374 = vld [vmem:[%s1 + $0x10] sm:$0xf]
        %v375 = vld [vmem:[%s1 + $0x14] sm:$0xf]
        %v376 = vld [vmem:[%s2] sm:$0x1]
        %v378 = vlaneseq
        %v379 = vshrl.u32 %v378, 7
        %v380 = vsub.s32 0, %v379
        %v381 = vrot.slane %v376, %v380
        %v389 = vunpack.c.l.b16 %v370
        %v390 = vunpack.c.l.b16 %v371
        %v391 = vunpack.c.l.b16 %v372
        %v392 = vunpack.c.l.b16 %v373
        %v393 = vunpack.c.l.b16 %v374
        %v394 = vunpack.c.l.b16 %v375
        %v395 = vpack.c.b16 %v390, %v389
        %v396 = vpack.c.b16 %v392, %v391
        %v397 = vpack.c.b16 %v394, %v393
        %vm401 = vcmask 392192
        %v402 = vsel %vm401, %v365, 0
        %v404 = vsel %vm401, %v367, 0
        %v406 = vsel %vm401, %v369, 0
        %408 = vmatprep.subr.bf16.mxu0 0
        %409 = vmatpush1.bf16.msra.mxu0 0
        %410 = vmatprep.subr.bf16.mxu0 0
        %411 = vmatpush1.bf16.msra.mxu0 0
        %412 = vmatprep.subr.bf16.mxu0 0
        %413 = vmatpush1.bf16.msra.mxu0 0
        %414 = vmatprep.subr.bf16.mxu0 0
        %415 = vmatpush1.bf16.msra.mxu0 0
        %416 = vmatprep.subr.bf16.mxu0 0
        %417 = vmatpush1.bf16.msra.mxu0 0
        %418 = vmatprep.subr.bf16.mxu0 0
        %419 = vmatpush1.bf16.msra.mxu0 %v397
        %420 = vmatprep.subr.bf16.mxu0 0
        %421 = vmatpush1.bf16.msra.mxu0 %v396
        %422 = vmatprep.subr.bf16.mxu0 0
        %423 = vmatpush1.bf16.msra.mxu0 %v395
        %424 = vmatprep.subr.bf16.mxu0 0
        %425 = vmatpush2.bf16.msra.mxu0 0
        %426 = vmatprep.subr.bf16.mxu0 0
        %427 = vmatpush2.bf16.msra.mxu0 0
        %428 = vmatprep.subr.bf16.mxu0 0
        %429 = vmatpush2.bf16.msra.mxu0 0
        %430 = vmatprep.subr.bf16.mxu0 0
        %431 = vmatpush2.bf16.msra.mxu0 0
        %432 = vmatprep.subr.bf16.mxu0 0
        %433 = vmatpush2.bf16.msra.mxu0 0
        %434 = vmatprep.subr.bf16.mxu0 0
        %435 = vmatpush2.bf16.msra.mxu0 0
        %436 = vmatprep.subr.bf16.mxu0 0
        %437 = vmatpush2.bf16.msra.mxu0 0
        %438 = vmatprep.subr.bf16.mxu0 0
        %439 = vmatpush2.bf16.msra.mxu0 0
        %440 = vmatprep.mubr.bf16.mxu0 0
        %441 = vmatmul.mubr.bf16.gmra.mxu0 %v402
        %v442 = vpop.f32.mrf.mxu0
        %v443 = vadd.f32 %v381, %v442
        %v444 = vpop.f32.mrf.mxu0
        %v445 = vpop.f32.mrf.mxu0
        %v446 = vadd.f32 %v381, %v445
        %v447 = vpop.f32.mrf.mxu0
        %448 = vmatprep.mubr.bf16.mxu0 0
        %449 = vmatmul.mubr.bf16.gmra.mxu0 %v404
        %v450 = vpop.f32.mrf.mxu0
        %v451 = vadd.f32 %v381, %v450
        %v452 = vpop.f32.mrf.mxu0
        %v453 = vpop.f32.mrf.mxu0
        %v454 = vadd.f32 %v381, %v453
        %v455 = vpop.f32.mrf.mxu0
        %456 = vmatprep.mubr.bf16.mxu0 0
        %457 = vmatmul.mubr.bf16.gmra.mxu0 %v406
        %v458 = vpop.f32.mrf.mxu0
        %v459 = vadd.f32 %v381, %v458
        %v460 = vpop.f32.mrf.mxu0
        %v461 = vpop.f32.mrf.mxu0
        %v462 = vadd.f32 %v381, %v461
        %v463 = vpop.f32.mrf.mxu0
        %464 = vdwg.mxu0
        %v465 = vmul.f32 %v443, 0.5
        %v466 = vmul.f32 %v446, 0.5
        %v467 = vmul.f32 %v451, 0.5
        %v468 = vmul.f32 %v454, 0.5
        %v469 = vmul.f32 %v459, 0.5
        %v470 = vmul.f32 %v462, 0.5
        %v471 = vmul.f32 %v443, 0.70710677
        %v472 = vmul.f32 %v446, 0.70710677
        %v473 = vmul.f32 %v451, 0.70710677
        %v474 = vmul.f32 %v454, 0.70710677
        %v475 = vmul.f32 %v459, 0.70710677
        %v476 = vmul.f32 %v462, 0.70710677
        %vm477 = vcmp.ge.f32.partialorder %v471, 0.0
        %vm478 = vcmp.ge.f32.partialorder %v472, 0.0
        %vm479 = vcmp.ge.f32.partialorder %v473, 0.0
        %vm480 = vcmp.ge.f32.partialorder %v474, 0.0
        %vm481 = vcmp.ge.f32.partialorder %v475, 0.0
        %vm482 = vcmp.ge.f32.partialorder %v476, 0.0
        %v483 = vsel %vm477, 1.0, -1.0
        %v484 = vsel %vm478, 1.0, -1.0
        %v485 = vsel %vm479, 1.0, -1.0
        %v486 = vsel %vm480, 1.0, -1.0
        %v487 = vsel %vm481, 1.0, -1.0
        %v488 = vsel %vm482, 1.0, -1.0
        %v489 = vmul.f32 %v471, %v483
        %v490 = vmul.f32 %v472, %v484
        %v491 = vmul.f32 %v473, %v485
        %v492 = vmul.f32 %v474, %v486
        %v493 = vmul.f32 %v475, %v487
        %v494 = vmul.f32 %v476, %v488
        %v495 = vmul.f32 %v489, 0.3275911
        %v496 = vmul.f32 %v490, 0.3275911
        %v497 = vmul.f32 %v491, 0.3275911
        %v498 = vmul.f32 %v492, 0.3275911
        %v499 = vmul.f32 %v493, 0.3275911
        %v500 = vmul.f32 %v494, 0.3275911
        %v501 = vadd.f32 %v495, 1.0
        %v502 = vadd.f32 %v496, 1.0
        %v503 = vadd.f32 %v497, 1.0
        %v504 = vadd.f32 %v498, 1.0
        %v505 = vadd.f32 %v499, 1.0
        %v506 = vadd.f32 %v500, 1.0
        %v507 = vrcp.pop %v501
        %v508 = vrcp.pop %v502
        %v509 = vrcp.pop %v503
        %v510 = vrcp.pop %v504
        %v511 = vrcp.pop %v505
        %v512 = vrcp.pop %v506
        %v513 = vmul.f32 %v501, %v507
        %v514 = vmul.f32 %v502, %v508
        %v515 = vmul.f32 %v503, %v509
        %v516 = vmul.f32 %v504, %v510
        %v517 = vmul.f32 %v505, %v511
        %v518 = vmul.f32 %v506, %v512
        %v519 = vsub.f32 2.0, %v513
        %v520 = vsub.f32 2.0, %v514
        %v521 = vsub.f32 2.0, %v515
        %v522 = vsub.f32 2.0, %v516
        %v523 = vsub.f32 2.0, %v517
        %v524 = vsub.f32 2.0, %v518
        %v525 = vmul.f32 %v507, %v519
        %v526 = vmul.f32 %v508, %v520
        %v527 = vmul.f32 %v509, %v521
        %v528 = vmul.f32 %v510, %v522
        %v529 = vmul.f32 %v511, %v523
        %v530 = vmul.f32 %v512, %v524
        %v531 = vmul.f32 %v525, 1.0614054
        %v532 = vmul.f32 %v526, 1.0614054
        %v533 = vmul.f32 %v527, 1.0614054
        %v534 = vmul.f32 %v528, 1.0614054
        %v535 = vmul.f32 %v529, 1.0614054
        %v536 = vmul.f32 %v530, 1.0614054
        %v537 = vadd.f32 %v531, -1.4531521
        %v538 = vadd.f32 %v532, -1.4531521
        %v539 = vadd.f32 %v533, -1.4531521
        %v540 = vadd.f32 %v534, -1.4531521
        %v541 = vadd.f32 %v535, -1.4531521
        %v542 = vadd.f32 %v536, -1.4531521
        %v543 = vmul.f32 %v537, %v525
        %v544 = vmul.f32 %v538, %v526
        %v545 = vmul.f32 %v539, %v527
        %v546 = vmul.f32 %v540, %v528
        %v547 = vmul.f32 %v541, %v529
        %v548 = vmul.f32 %v542, %v530
        %v549 = vadd.f32 %v543, 1.4214138
        %v550 = vadd.f32 %v544, 1.4214138
        %v551 = vadd.f32 %v545, 1.4214138
        %v552 = vadd.f32 %v546, 1.4214138
        %v553 = vadd.f32 %v547, 1.4214138
        %v554 = vadd.f32 %v548, 1.4214138
        %v555 = vmul.f32 %v549, %v525
        %v556 = vmul.f32 %v550, %v526
        %v557 = vmul.f32 %v551, %v527
        %v558 = vmul.f32 %v552, %v528
        %v559 = vmul.f32 %v553, %v529
        %v560 = vmul.f32 %v554, %v530
        %v561 = vadd.f32 %v555, -0.28449672
        %v562 = vadd.f32 %v556, -0.28449672
        %v563 = vadd.f32 %v557, -0.28449672
        %v564 = vadd.f32 %v558, -0.28449672
        %v565 = vadd.f32 %v559, -0.28449672
        %v566 = vadd.f32 %v560, -0.28449672
        %v567 = vmul.f32 %v561, %v525
        %v568 = vmul.f32 %v562, %v526
        %v569 = vmul.f32 %v563, %v527
        %v570 = vmul.f32 %v564, %v528
        %v571 = vmul.f32 %v565, %v529
        %v572 = vmul.f32 %v566, %v530
        %v573 = vadd.f32 %v567, 0.2548296
        %v574 = vadd.f32 %v568, 0.2548296
        %v575 = vadd.f32 %v569, 0.2548296
        %v576 = vadd.f32 %v570, 0.2548296
        %v577 = vadd.f32 %v571, 0.2548296
        %v578 = vadd.f32 %v572, 0.2548296
        %v579 = vmul.f32 %v573, %v525
        %v580 = vmul.f32 %v574, %v526
        %v581 = vmul.f32 %v575, %v527
        %v582 = vmul.f32 %v576, %v528
        %v583 = vmul.f32 %v577, %v529
        %v584 = vmul.f32 %v578, %v530
        %v585 = vsub.f32 0.0, %v489
        %v586 = vsub.f32 0.0, %v490
        %v587 = vsub.f32 0.0, %v491
        %v588 = vsub.f32 0.0, %v492
        %v589 = vsub.f32 0.0, %v493
        %v590 = vsub.f32 0.0, %v494
        %v591 = vmul.f32 %v585, %v489
        %v592 = vmul.f32 %v586, %v490
        %v593 = vmul.f32 %v587, %v491
        %v594 = vmul.f32 %v588, %v492
        %v595 = vmul.f32 %v589, %v493
        %v596 = vmul.f32 %v590, %v494
        %v597 = vmul.f32 %v591, 1.442695
        %v598 = vpow.pop %v597
        %v599 = vmul.f32 %v592, 1.442695
        %v600 = vpow.pop %v599
        %v601 = vmul.f32 %v593, 1.442695
        %v602 = vpow.pop %v601
        %v603 = vmul.f32 %v594, 1.442695
        %v604 = vpow.pop %v603
        %v605 = vmul.f32 %v595, 1.442695
        %v606 = vpow.pop %v605
        %v607 = vmul.f32 %v596, 1.442695
        %v608 = vpow.pop %v607
        %v609 = vmul.f32 %v579, %v598
        %v610 = vmul.f32 %v580, %v600
        %v611 = vmul.f32 %v581, %v602
        %v612 = vmul.f32 %v582, %v604
        %v613 = vmul.f32 %v583, %v606
        %v614 = vmul.f32 %v584, %v608
        %v615 = vsub.f32 1.0, %v609
        %v616 = vsub.f32 1.0, %v610
        %v617 = vsub.f32 1.0, %v611
        %v618 = vsub.f32 1.0, %v612
        %v619 = vsub.f32 1.0, %v613
        %v620 = vsub.f32 1.0, %v614
        %v621 = vmul.f32 %v483, %v615
        %v622 = vmul.f32 %v484, %v616
        %v623 = vmul.f32 %v485, %v617
        %v624 = vmul.f32 %v486, %v618
        %v625 = vmul.f32 %v487, %v619
        %v626 = vmul.f32 %v488, %v620
        %v627 = vadd.f32 %v621, 1.0
        %v628 = vadd.f32 %v622, 1.0
        %v629 = vadd.f32 %v623, 1.0
        %v630 = vadd.f32 %v624, 1.0
        %v631 = vadd.f32 %v625, 1.0
        %v632 = vadd.f32 %v626, 1.0
        %v633 = vmul.f32 %v465, %v627
        %v634 = vmul.f32 %v466, %v628
        %v635 = vmul.f32 %v467, %v629
        %v636 = vmul.f32 %v468, %v630
        %v637 = vmul.f32 %v469, %v631
        %v638 = vmul.f32 %v470, %v632
        %639 = vst [vmem:[#allocation2] sm:$0xff] %v633
        %640 = vst [vmem:[#allocation2 + $0x8] sm:$0xff] %v634
        %641 = vst [vmem:[#allocation2 + $0x10] sm:$0xff] %v635
        %642 = vst [vmem:[#allocation2 + $0x18] sm:$0xff] %v636
        %643 = vst [vmem:[#allocation2 + $0x20] sm:$0xff] %v637
        %644 = vst [vmem:[#allocation2 + $0x28] sm:$0xff] %v638
        %645 = vst [vmem:[#allocation2 + $0x30] sm:$0xff] 0.0
        %v646 = vld [vmem:[#allocation2] ss:$2 sm:$0xff]
        %s647 = scalar_lea.vmem [#allocation2], 16
        %v648 = vld [vmem:[%s647] ss:$2 sm:$0xff]
        %s649 = scalar_lea.vmem [#allocation2], 32
        %v650 = vld [vmem:[%s649] ss:$2 sm:$0xff]
        %v651 = vpack.c.bf16 %v648, %v646
        %v652 = vpack.c.bf16 %v650, %v650
        %s653 = scalar_lea.vmem [#allocation2], 1
        %v654 = vld [vmem:[%s653] ss:$2 sm:$0xff]
        %s655 = scalar_lea.vmem [#allocation2], 17
        %v656 = vld [vmem:[%s655] ss:$2 sm:$0xff]
        %s657 = scalar_lea.vmem [#allocation2], 33
        %v658 = vld [vmem:[%s657] ss:$2 sm:$0xff]
        %v659 = vpack.c.bf16 %v656, %v654
        %v660 = vpack.c.bf16 %v658, %v658
        %s661 = scalar_lea.vmem [#allocation2], 2
        %v662 = vld [vmem:[%s661] ss:$2 sm:$0xff]
        %s663 = scalar_lea.vmem [#allocation2], 18
        %v664 = vld [vmem:[%s663] ss:$2 sm:$0xff]
        %s665 = scalar_lea.vmem [#allocation2], 34
        %v666 = vld [vmem:[%s665] ss:$2 sm:$0xff]
        %v667 = vpack.c.bf16 %v664, %v662
        %v668 = vpack.c.bf16 %v666, %v666
        %v669 = vld [vmem:[#allocation4] sm:$0xf]
        %v670 = vld [vmem:[#allocation4 + $0x4] sm:$0xf]
        %v671 = vld [vmem:[#allocation4 + $0x8] sm:$0xf]
        %v672 = vld [vmem:[#allocation4 + $0xc] sm:$0xf]
        %v673 = vld [vmem:[#allocation4 + $0x10] sm:$0xf]
        %v674 = vld [vmem:[#allocation4 + $0x14] sm:$0xf]
        %v675 = vld [vmem:[#allocation4 + $0x18] sm:$0xf]
        %v676 = vld [vmem:[#allocation4 + $0x1c] sm:$0xf]
        %v677 = vld [vmem:[#allocation4 + $0x20] sm:$0xf]
        %v678 = vld [vmem:[#allocation4 + $0x24] sm:$0xf]
        %v679 = vld [vmem:[#allocation4 + $0x28] sm:$0xf]
        %v680 = vld [vmem:[#allocation4 + $0x2c] sm:$0xf]
        %v681 = vld [vmem:[#allocation4 + $0x30] sm:$0xf]
        %v682 = vld [vmem:[#allocation4 + $0x34] sm:$0xf]
        %v683 = vld [vmem:[#allocation4 + $0x38] sm:$0xf]
        %v684 = vld [vmem:[#allocation4 + $0x3c] sm:$0xf]
        %v685 = vld [vmem:[#allocation4 + $0x40] sm:$0xf]
        %v686 = vld [vmem:[#allocation4 + $0x44] sm:$0xf]
        %v687 = vld [vmem:[#allocation4 + $0x48] sm:$0xf]
        %v688 = vld [vmem:[#allocation4 + $0x4c] sm:$0xf]
        %v689 = vld [vmem:[#allocation4 + $0x50] sm:$0xf]
        %v690 = vld [vmem:[#allocation4 + $0x54] sm:$0xf]
        %v691 = vld [vmem:[#allocation4 + $0x58] sm:$0xf]
        %v692 = vld [vmem:[#allocation4 + $0x5c] sm:$0xf]
        %v693 = vld [vmem:[#allocation4 + $0x60] sm:$0xf]
        %v694 = vld [vmem:[#allocation4 + $0x64] sm:$0xf]
        %v695 = vld [vmem:[#allocation4 + $0x68] sm:$0xf]
        %v696 = vld [vmem:[#allocation4 + $0x6c] sm:$0xf]
        %v697 = vld [vmem:[#allocation4 + $0x70] sm:$0xf]
        %v698 = vld [vmem:[#allocation4 + $0x74] sm:$0xf]
        %v699 = vld [vmem:[#allocation4 + $0x78] sm:$0xf]
        %v700 = vld [vmem:[#allocation4 + $0x7c] sm:$0xf]
        %v701 = vld [vmem:[#allocation4 + $0x80] sm:$0xf]
        %v702 = vld [vmem:[#allocation4 + $0x84] sm:$0xf]
        %v703 = vld [vmem:[#allocation4 + $0x88] sm:$0xf]
        %v704 = vld [vmem:[#allocation4 + $0x8c] sm:$0xf]
        %v705 = vld [vmem:[#allocation4 + $0x90] sm:$0xf]
        %v706 = vld [vmem:[#allocation4 + $0x94] sm:$0xf]
        %v707 = vld [vmem:[#allocation4 + $0x98] sm:$0xf]
        %v708 = vld [vmem:[#allocation4 + $0x9c] sm:$0xf]
        %v709 = vld [vmem:[#allocation4 + $0xa0] sm:$0xf]
        %v710 = vld [vmem:[#allocation4 + $0xa4] sm:$0xf]
        %v711 = vld [vmem:[#allocation4 + $0xa8] sm:$0xf]
        %v712 = vld [vmem:[#allocation4 + $0xac] sm:$0xf]
        %v713 = vld [vmem:[#allocation4 + $0xb0] sm:$0xf]
        %v714 = vld [vmem:[#allocation4 + $0xb4] sm:$0xf]
        %v715 = vld [vmem:[#allocation4 + $0xb8] sm:$0xf]
        %v716 = vld [vmem:[#allocation4 + $0xbc] sm:$0xf]
        %v717 = vld [vmem:[%s4] sm:$0x1]
        %v719 = vlaneseq
        %v720 = vshrl.u32 %v719, 7
        %v721 = vsub.s32 0, %v720
        %v722 = vrot.slane %v717, %v721
        %v772 = vunpack.c.l.b16 %v669
        %v773 = vunpack.c.l.b16 %v670
        %v774 = vunpack.c.l.b16 %v671
        %v775 = vunpack.c.l.b16 %v672
        %v776 = vunpack.c.l.b16 %v673
        %v777 = vunpack.c.l.b16 %v674
        %v778 = vunpack.c.l.b16 %v675
        %v779 = vunpack.c.l.b16 %v676
        %v780 = vunpack.c.l.b16 %v677
        %v781 = vunpack.c.l.b16 %v678
        %v782 = vunpack.c.l.b16 %v679
        %v783 = vunpack.c.l.b16 %v680
        %v784 = vunpack.c.l.b16 %v681
        %v785 = vunpack.c.l.b16 %v682
        %v786 = vunpack.c.l.b16 %v683
        %v787 = vunpack.c.l.b16 %v684
        %v788 = vunpack.c.l.b16 %v685
        %v789 = vunpack.c.l.b16 %v686
        %v790 = vunpack.c.l.b16 %v687
        %v791 = vunpack.c.l.b16 %v688
        %v792 = vunpack.c.l.b16 %v689
        %v793 = vunpack.c.l.b16 %v690
        %v794 = vunpack.c.l.b16 %v691
        %v795 = vunpack.c.l.b16 %v692
        %v796 = vunpack.c.l.b16 %v693
        %v797 = vunpack.c.l.b16 %v694
        %v798 = vunpack.c.l.b16 %v695
        %v799 = vunpack.c.l.b16 %v696
        %v800 = vunpack.c.l.b16 %v697
        %v801 = vunpack.c.l.b16 %v698
        %v802 = vunpack.c.l.b16 %v699
        %v803 = vunpack.c.l.b16 %v700
        %v804 = vunpack.c.l.b16 %v701
        %v805 = vunpack.c.l.b16 %v702
        %v806 = vunpack.c.l.b16 %v703
        %v807 = vunpack.c.l.b16 %v704
        %v808 = vunpack.c.l.b16 %v705
        %v809 = vunpack.c.l.b16 %v706
        %v810 = vunpack.c.l.b16 %v707
        %v811 = vunpack.c.l.b16 %v708
        %v812 = vunpack.c.l.b16 %v709
        %v813 = vunpack.c.l.b16 %v710
        %v814 = vunpack.c.l.b16 %v711
        %v815 = vunpack.c.l.b16 %v712
        %v816 = vunpack.c.l.b16 %v713
        %v817 = vunpack.c.l.b16 %v714
        %v818 = vunpack.c.l.b16 %v715
        %v819 = vunpack.c.l.b16 %v716
        %v820 = vpack.c.b16 %v773, %v772
        %v821 = vpack.c.b16 %v775, %v774
        %v822 = vpack.c.b16 %v777, %v776
        %v823 = vpack.c.b16 %v779, %v778
        %v824 = vpack.c.b16 %v781, %v780
        %v825 = vpack.c.b16 %v783, %v782
        %v826 = vpack.c.b16 %v785, %v784
        %v827 = vpack.c.b16 %v787, %v786
        %v828 = vpack.c.b16 %v789, %v788
        %v829 = vpack.c.b16 %v791, %v790
        %v830 = vpack.c.b16 %v793, %v792
        %v831 = vpack.c.b16 %v795, %v794
        %v832 = vpack.c.b16 %v797, %v796
        %v833 = vpack.c.b16 %v799, %v798
        %v834 = vpack.c.b16 %v801, %v800
        %v835 = vpack.c.b16 %v803, %v802
        %v836 = vpack.c.b16 %v805, %v804
        %v837 = vpack.c.b16 %v807, %v806
        %v838 = vpack.c.b16 %v809, %v808
        %v839 = vpack.c.b16 %v811, %v810
        %v840 = vpack.c.b16 %v813, %v812
        %v841 = vpack.c.b16 %v815, %v814
        %v842 = vpack.c.b16 %v817, %v816
        %v843 = vpack.c.b16 %v819, %v818
        %868 = vmatprep.subr.bf16.mxu0 0
        %869 = vmatpush1.bf16.msra.mxu0 %v827
        %870 = vmatprep.subr.bf16.mxu0 0
        %871 = vmatpush1.bf16.msra.mxu0 %v826
        %872 = vmatprep.subr.bf16.mxu0 0
        %873 = vmatpush1.bf16.msra.mxu0 %v825
        %874 = vmatprep.subr.bf16.mxu0 0
        %875 = vmatpush1.bf16.msra.mxu0 %v824
        %876 = vmatprep.subr.bf16.mxu0 0
        %877 = vmatpush1.bf16.msra.mxu0 %v823
        %878 = vmatprep.subr.bf16.mxu0 0
        %879 = vmatpush1.bf16.msra.mxu0 %v822
        %880 = vmatprep.subr.bf16.mxu0 0
        %881 = vmatpush1.bf16.msra.mxu0 %v821
        %882 = vmatprep.subr.bf16.mxu0 0
        %883 = vmatpush1.bf16.msra.mxu0 %v820
        %884 = vmatprep.subr.bf16.mxu0 0
        %885 = vmatpush2.bf16.msra.mxu0 %v835
        %886 = vmatprep.subr.bf16.mxu0 0
        %887 = vmatpush2.bf16.msra.mxu0 %v834
        %888 = vmatprep.subr.bf16.mxu0 0
        %889 = vmatpush2.bf16.msra.mxu0 %v833
        %890 = vmatprep.subr.bf16.mxu0 0
        %891 = vmatpush2.bf16.msra.mxu0 %v832
        %892 = vmatprep.subr.bf16.mxu0 0
        %893 = vmatpush2.bf16.msra.mxu0 %v831
        %894 = vmatprep.subr.bf16.mxu0 0
        %895 = vmatpush2.bf16.msra.mxu0 %v830
        %896 = vmatprep.subr.bf16.mxu0 0
        %897 = vmatpush2.bf16.msra.mxu0 %v829
        %898 = vmatprep.subr.bf16.mxu0 0
        %899 = vmatpush2.bf16.msra.mxu0 %v828
        %900 = vmatprep.mubr.bf16.mxu0 %v659
        %901 = vmatmul.mubr.bf16.gmra.mxu0 %v651
        %v902 = vpop.f32.mrf.mxu0
        %v903 = vadd.f32 %v722, %v902
        %v904 = vpop.f32.mrf.mxu0
        %v905 = vpop.f32.mrf.mxu0
        %v906 = vadd.f32 %v722, %v905
        %v907 = vpop.f32.mrf.mxu0
        %908 = vmatprep.mubr.bf16.mxu0 %v660
        %909 = vmatmul.mubr.bf16.gmra.mxu0 %v652
        %v910 = vpop.f32.mrf.mxu0
        %v911 = vadd.f32 %v722, %v910
        %v912 = vpop.f32.mrf.mxu0
        %v913 = vpop.f32.mrf.mxu0
        %v914 = vpop.f32.mrf.mxu0
        %915 = vdwg.mxu0
        %916 = vmatprep.subr.bf16.mxu0 0
        %917 = vmatpush1.bf16.msra.mxu0 %v843
        %918 = vmatprep.subr.bf16.mxu0 0
        %919 = vmatpush1.bf16.msra.mxu0 %v842
        %920 = vmatprep.subr.bf16.mxu0 0
        %921 = vmatpush1.bf16.msra.mxu0 %v841
        %922 = vmatprep.subr.bf16.mxu0 0
        %923 = vmatpush1.bf16.msra.mxu0 %v840
        %924 = vmatprep.subr.bf16.mxu0 0
        %925 = vmatpush1.bf16.msra.mxu0 %v839
        %926 = vmatprep.subr.bf16.mxu0 0
        %927 = vmatpush1.bf16.msra.mxu0 %v838
        %928 = vmatprep.subr.bf16.mxu0 0
        %929 = vmatpush1.bf16.msra.mxu0 %v837
        %930 = vmatprep.subr.bf16.mxu0 0
        %931 = vmatpush1.bf16.msra.mxu0 %v836
        %932 = vmatprep.subr.bf16.mxu0 0
        %933 = vmatpush2.bf16.msra.mxu0 0
        %934 = vmatprep.subr.bf16.mxu0 0
        %935 = vmatpush2.bf16.msra.mxu0 0
        %936 = vmatprep.subr.bf16.mxu0 0
        %937 = vmatpush2.bf16.msra.mxu0 0
        %938 = vmatprep.subr.bf16.mxu0 0
        %939 = vmatpush2.bf16.msra.mxu0 0
        %940 = vmatprep.subr.bf16.mxu0 0
        %941 = vmatpush2.bf16.msra.mxu0 0
        %942 = vmatprep.subr.bf16.mxu0 0
        %943 = vmatpush2.bf16.msra.mxu0 0
        %944 = vmatprep.subr.bf16.mxu0 0
        %945 = vmatpush2.bf16.msra.mxu0 0
        %946 = vmatprep.subr.bf16.mxu0 0
        %947 = vmatpush2.bf16.msra.mxu0 0
        %948 = vmatprep.mubr.bf16.mxu0 0
        %949 = vmatmul.mubr.bf16.gmra.mxu0 %v667
        %v950 = vpop.f32.mrf.mxu0
        %v951 = vadd.f32 %v903, %v950
        %v952 = vpop.f32.mrf.mxu0
        %v953 = vpop.f32.mrf.mxu0
        %v954 = vadd.f32 %v906, %v953
        %v955 = vpop.f32.mrf.mxu0
        %956 = vmatprep.mubr.bf16.mxu0 0
        %957 = vmatmul.mubr.bf16.gmra.mxu0 %v668
        %v958 = vpop.f32.mrf.mxu0
        %v959 = vadd.f32 %v911, %v958
        %v960 = vpop.f32.mrf.mxu0
        %v961 = vpop.f32.mrf.mxu0
        %v962 = vpop.f32.mrf.mxu0
        %963 = vdwg.mxu0
        %v964 = vmul.f32 %v951, 0.5
        %v965 = vmul.f32 %v954, 0.5
        %v966 = vmul.f32 %v959, 0.5
        %v967 = vmul.f32 %v951, 0.70710677
        %v968 = vmul.f32 %v954, 0.70710677
        %v969 = vmul.f32 %v959, 0.70710677
        %vm970 = vcmp.ge.f32.partialorder %v967, 0.0
        %vm971 = vcmp.ge.f32.partialorder %v968, 0.0
        %vm972 = vcmp.ge.f32.partialorder %v969, 0.0
        %v973 = vsel %vm970, 1.0, -1.0
        %v974 = vsel %vm971, 1.0, -1.0
        %v975 = vsel %vm972, 1.0, -1.0
        %v976 = vmul.f32 %v967, %v973
        %v977 = vmul.f32 %v968, %v974
        %v978 = vmul.f32 %v969, %v975
        %v979 = vmul.f32 %v976, 0.3275911
        %v980 = vmul.f32 %v977, 0.3275911
        %v981 = vmul.f32 %v978, 0.3275911
        %v982 = vadd.f32 %v979, 1.0
        %v983 = vadd.f32 %v980, 1.0
        %v984 = vadd.f32 %v981, 1.0
        %v985 = vrcp.pop %v982
        %v986 = vrcp.pop %v983
        %v987 = vrcp.pop %v984
        %v988 = vmul.f32 %v982, %v985
        %v989 = vmul.f32 %v983, %v986
        %v990 = vmul.f32 %v984, %v987
        %v991 = vsub.f32 2.0, %v988
        %v992 = vsub.f32 2.0, %v989
        %v993 = vsub.f32 2.0, %v990
        %v994 = vmul.f32 %v985, %v991
        %v995 = vmul.f32 %v986, %v992
        %v996 = vmul.f32 %v987, %v993
        %v997 = vmul.f32 %v994, 1.0614054
        %v998 = vmul.f32 %v995, 1.0614054
        %v999 = vmul.f32 %v996, 1.0614054
        %v1000 = vadd.f32 %v997, -1.4531521
        %v1001 = vadd.f32 %v998, -1.4531521
        %v1002 = vadd.f32 %v999, -1.4531521
        %v1003 = vmul.f32 %v1000, %v994
        %v1004 = vmul.f32 %v1001, %v995
        %v1005 = vmul.f32 %v1002, %v996
        %v1006 = vadd.f32 %v1003, 1.4214138
        %v1007 = vadd.f32 %v1004, 1.4214138
        %v1008 = vadd.f32 %v1005, 1.4214138
        %v1009 = vmul.f32 %v1006, %v994
        %v1010 = vmul.f32 %v1007, %v995
        %v1011 = vmul.f32 %v1008, %v996
        %v1012 = vadd.f32 %v1009, -0.28449672
        %v1013 = vadd.f32 %v1010, -0.28449672
        %v1014 = vadd.f32 %v1011, -0.28449672
        %v1015 = vmul.f32 %v1012, %v994
        %v1016 = vmul.f32 %v1013, %v995
        %v1017 = vmul.f32 %v1014, %v996
        %v1018 = vadd.f32 %v1015, 0.2548296
        %v1019 = vadd.f32 %v1016, 0.2548296
        %v1020 = vadd.f32 %v1017, 0.2548296
        %v1021 = vmul.f32 %v1018, %v994
        %v1022 = vmul.f32 %v1019, %v995
        %v1023 = vmul.f32 %v1020, %v996
        %v1024 = vsub.f32 0.0, %v976
        %v1025 = vsub.f32 0.0, %v977
        %v1026 = vsub.f32 0.0, %v978
        %v1027 = vmul.f32 %v1024, %v976
        %v1028 = vmul.f32 %v1025, %v977
        %v1029 = vmul.f32 %v1026, %v978
        %v1030 = vmul.f32 %v1027, 1.442695
        %v1031 = vpow.pop %v1030
        %v1032 = vmul.f32 %v1028, 1.442695
        %v1033 = vpow.pop %v1032
        %v1034 = vmul.f32 %v1029, 1.442695
        %v1035 = vpow.pop %v1034
        %v1036 = vmul.f32 %v1021, %v1031
        %v1037 = vmul.f32 %v1022, %v1033
        %v1038 = vmul.f32 %v1023, %v1035
        %v1039 = vsub.f32 1.0, %v1036
        %v1040 = vsub.f32 1.0, %v1037
        %v1041 = vsub.f32 1.0, %v1038
        %v1042 = vmul.f32 %v973, %v1039
        %v1043 = vmul.f32 %v974, %v1040
        %v1044 = vmul.f32 %v975, %v1041
        %v1045 = vadd.f32 %v1042, 1.0
        %v1046 = vadd.f32 %v1043, 1.0
        %v1047 = vadd.f32 %v1044, 1.0
        %v1048 = vmul.f32 %v964, %v1045
        %v1049 = vmul.f32 %v965, %v1046
        %v1050 = vmul.f32 %v966, %v1047
        %1051 = vst [vmem:[#allocation3] sm:$0xff] %v1048
        %1052 = vst [vmem:[#allocation3 + $0x8] sm:$0xff] %v1049
        %1053 = vst [vmem:[#allocation3 + $0x10] sm:$0xff] %v1050
        %v1054 = vld [vmem:[#allocation3] ss:$3 sm:$0xff]
        %v1055 = vpack.c.bf16 %v1054, %v1054
        %s1056 = scalar_lea.vmem [#allocation3], 1
        %v1057 = vld [vmem:[%s1056] ss:$3 sm:$0xff]
        %v1058 = vpack.c.bf16 %v1057, %v1057
        %s1059 = scalar_lea.vmem [#allocation3], 2
        %v1060 = vld [vmem:[%s1059] ss:$3 sm:$0xff]
        %v1061 = vpack.c.bf16 %v1060, %v1060
        %v1062 = vld [vmem:[#allocation7] sm:$0xf]
        %v1063 = vld [vmem:[#allocation7 + $0x4] sm:$0xf]
        %v1064 = vld [vmem:[#allocation7 + $0x8] sm:$0xf]
        %v1065 = vld [vmem:[#allocation7 + $0xc] sm:$0xf]
        %v1066 = vld [vmem:[#allocation7 + $0x10] sm:$0xf]
        %v1067 = vld [vmem:[#allocation7 + $0x14] sm:$0xf]
        %v1068 = vld [vmem:[#allocation7 + $0x18] sm:$0xf]
        %v1069 = vld [vmem:[#allocation7 + $0x1c] sm:$0xf]
        %v1070 = vld [vmem:[#allocation7 + $0x20] sm:$0xf]
        %v1071 = vld [vmem:[#allocation7 + $0x24] sm:$0xf]
        %v1072 = vld [vmem:[#allocation7 + $0x28] sm:$0xf]
        %v1073 = vld [vmem:[#allocation7 + $0x2c] sm:$0xf]
        %v1074 = vld [vmem:[#allocation7 + $0x30] sm:$0xf]
        %v1075 = vld [vmem:[#allocation7 + $0x34] sm:$0xf]
        %v1076 = vld [vmem:[#allocation7 + $0x38] sm:$0xf]
        %v1077 = vld [vmem:[#allocation7 + $0x3c] sm:$0xf]
        %v1078 = vld [vmem:[#allocation7 + $0x40] sm:$0xf]
        %v1079 = vld [vmem:[#allocation7 + $0x44] sm:$0xf]
        %v1080 = vld [vmem:[#allocation7 + $0x48] sm:$0xf]
        %v1081 = vld [vmem:[#allocation7 + $0x4c] sm:$0xf]
        %v1082 = vld [vmem:[#allocation7 + $0x50] sm:$0xf]
        %v1083 = vld [vmem:[#allocation7 + $0x54] sm:$0xf]
        %v1084 = vld [vmem:[#allocation7 + $0x58] sm:$0xf]
        %v1085 = vld [vmem:[#allocation7 + $0x5c] sm:$0xf]
        %v1086 = vld [vmem:[#allocation7 + $0x60] sm:$0xf]
        %v1087 = vld [vmem:[#allocation7 + $0x64] sm:$0xf]
        %v1088 = vld [vmem:[#allocation7 + $0x68] sm:$0xf]
        %v1089 = vld [vmem:[#allocation7 + $0x6c] sm:$0xf]
        %v1090 = vld [vmem:[#allocation7 + $0x70] sm:$0xf]
        %v1091 = vld [vmem:[#allocation7 + $0x74] sm:$0xf]
        %v1092 = vld [vmem:[#allocation7 + $0x78] sm:$0xf]
        %v1093 = vld [vmem:[#allocation7 + $0x7c] sm:$0xf]
        %v1094 = vld [vmem:[#allocation7 + $0x80] sm:$0xf]
        %v1095 = vld [vmem:[#allocation7 + $0x84] sm:$0xf]
        %v1096 = vld [vmem:[#allocation7 + $0x88] sm:$0xf]
        %v1097 = vld [vmem:[#allocation7 + $0x8c] sm:$0xf]
        %v1098 = vld [vmem:[#allocation7 + $0x90] sm:$0xf]
        %v1099 = vld [vmem:[#allocation7 + $0x94] sm:$0xf]
        %v1100 = vld [vmem:[#allocation7 + $0x98] sm:$0xf]
        %v1101 = vld [vmem:[#allocation7 + $0x9c] sm:$0xf]
        %v1102 = vld [vmem:[#allocation7 + $0xa0] sm:$0xf]
        %v1103 = vld [vmem:[#allocation7 + $0xa4] sm:$0xf]
        %v1104 = vld [vmem:[#allocation7 + $0xa8] sm:$0xf]
        %v1105 = vld [vmem:[#allocation7 + $0xac] sm:$0xf]
        %v1106 = vld [vmem:[#allocation7 + $0xb0] sm:$0xf]
        %v1107 = vld [vmem:[#allocation7 + $0xb4] sm:$0xf]
        %v1108 = vld [vmem:[#allocation7 + $0xb8] sm:$0xf]
        %v1109 = vld [vmem:[#allocation7 + $0xbc] sm:$0xf]
        %v1110 = vld [vmem:[%s6] sm:$0x1]
        %v1112 = vlaneseq
        %v1113 = vshrl.u32 %v1112, 7
        %v1114 = vsub.s32 0, %v1113
        %v1115 = vrot.slane %v1110, %v1114
        %v1165 = vunpack.c.l.b16 %v1062
        %v1166 = vunpack.c.l.b16 %v1063
        %v1167 = vunpack.c.l.b16 %v1064
        %v1168 = vunpack.c.l.b16 %v1065
        %v1169 = vunpack.c.l.b16 %v1066
        %v1170 = vunpack.c.l.b16 %v1067
        %v1171 = vunpack.c.l.b16 %v1068
        %v1172 = vunpack.c.l.b16 %v1069
        %v1173 = vunpack.c.l.b16 %v1070
        %v1174 = vunpack.c.l.b16 %v1071
        %v1175 = vunpack.c.l.b16 %v1072
        %v1176 = vunpack.c.l.b16 %v1073
        %v1177 = vunpack.c.l.b16 %v1074
        %v1178 = vunpack.c.l.b16 %v1075
        %v1179 = vunpack.c.l.b16 %v1076
        %v1180 = vunpack.c.l.b16 %v1077
        %v1181 = vunpack.c.l.b16 %v1078
        %v1182 = vunpack.c.l.b16 %v1079
        %v1183 = vunpack.c.l.b16 %v1080
        %v1184 = vunpack.c.l.b16 %v1081
        %v1185 = vunpack.c.l.b16 %v1082
        %v1186 = vunpack.c.l.b16 %v1083
        %v1187 = vunpack.c.l.b16 %v1084
        %v1188 = vunpack.c.l.b16 %v1085
        %v1189 = vunpack.c.l.b16 %v1086
        %v1190 = vunpack.c.l.b16 %v1087
        %v1191 = vunpack.c.l.b16 %v1088
        %v1192 = vunpack.c.l.b16 %v1089
        %v1193 = vunpack.c.l.b16 %v1090
        %v1194 = vunpack.c.l.b16 %v1091
        %v1195 = vunpack.c.l.b16 %v1092
        %v1196 = vunpack.c.l.b16 %v1093
        %v1197 = vunpack.c.l.b16 %v1094
        %v1198 = vunpack.c.l.b16 %v1095
        %v1199 = vunpack.c.l.b16 %v1096
        %v1200 = vunpack.c.l.b16 %v1097
        %v1201 = vunpack.c.l.b16 %v1098
        %v1202 = vunpack.c.l.b16 %v1099
        %v1203 = vunpack.c.l.b16 %v1100
        %v1204 = vunpack.c.l.b16 %v1101
        %v1205 = vunpack.c.l.b16 %v1102
        %v1206 = vunpack.c.l.b16 %v1103
        %v1207 = vunpack.c.l.b16 %v1104
        %v1208 = vunpack.c.l.b16 %v1105
        %v1209 = vunpack.c.l.b16 %v1106
        %v1210 = vunpack.c.l.b16 %v1107
        %v1211 = vunpack.c.l.b16 %v1108
        %v1212 = vunpack.c.l.b16 %v1109
        %v1213 = vpack.c.b16 %v1166, %v1165
        %v1214 = vpack.c.b16 %v1168, %v1167
        %v1215 = vpack.c.b16 %v1170, %v1169
        %v1216 = vpack.c.b16 %v1172, %v1171
        %v1217 = vpack.c.b16 %v1174, %v1173
        %v1218 = vpack.c.b16 %v1176, %v1175
        %v1219 = vpack.c.b16 %v1178, %v1177
        %v1220 = vpack.c.b16 %v1180, %v1179
        %v1221 = vpack.c.b16 %v1182, %v1181
        %v1222 = vpack.c.b16 %v1184, %v1183
        %v1223 = vpack.c.b16 %v1186, %v1185
        %v1224 = vpack.c.b16 %v1188, %v1187
        %v1225 = vpack.c.b16 %v1190, %v1189
        %v1226 = vpack.c.b16 %v1192, %v1191
        %v1227 = vpack.c.b16 %v1194, %v1193
        %v1228 = vpack.c.b16 %v1196, %v1195
        %v1229 = vpack.c.b16 %v1198, %v1197
        %v1230 = vpack.c.b16 %v1200, %v1199
        %v1231 = vpack.c.b16 %v1202, %v1201
        %v1232 = vpack.c.b16 %v1204, %v1203
        %v1233 = vpack.c.b16 %v1206, %v1205
        %v1234 = vpack.c.b16 %v1208, %v1207
        %v1235 = vpack.c.b16 %v1210, %v1209
        %v1236 = vpack.c.b16 %v1212, %v1211
        %1261 = vmatprep.subr.bf16.mxu0 0
        %1262 = vmatpush1.bf16.msra.mxu0 %v1220
        %1263 = vmatprep.subr.bf16.mxu0 0
        %1264 = vmatpush1.bf16.msra.mxu0 %v1219
        %1265 = vmatprep.subr.bf16.mxu0 0
        %1266 = vmatpush1.bf16.msra.mxu0 %v1218
        %1267 = vmatprep.subr.bf16.mxu0 0
        %1268 = vmatpush1.bf16.msra.mxu0 %v1217
        %1269 = vmatprep.subr.bf16.mxu0 0
        %1270 = vmatpush1.bf16.msra.mxu0 %v1216
        %1271 = vmatprep.subr.bf16.mxu0 0
        %1272 = vmatpush1.bf16.msra.mxu0 %v1215
        %1273 = vmatprep.subr.bf16.mxu0 0
        %1274 = vmatpush1.bf16.msra.mxu0 %v1214
        %1275 = vmatprep.subr.bf16.mxu0 0
        %1276 = vmatpush1.bf16.msra.mxu0 %v1213
        %1277 = vmatprep.subr.bf16.mxu0 0
        %1278 = vmatpush2.bf16.msra.mxu0 %v1228
        %1279 = vmatprep.subr.bf16.mxu0 0
        %1280 = vmatpush2.bf16.msra.mxu0 %v1227
        %1281 = vmatprep.subr.bf16.mxu0 0
        %1282 = vmatpush2.bf16.msra.mxu0 %v1226
        %1283 = vmatprep.subr.bf16.mxu0 0
        %1284 = vmatpush2.bf16.msra.mxu0 %v1225
        %1285 = vmatprep.subr.bf16.mxu0 0
        %1286 = vmatpush2.bf16.msra.mxu0 %v1224
        %1287 = vmatprep.subr.bf16.mxu0 0
        %1288 = vmatpush2.bf16.msra.mxu0 %v1223
        %1289 = vmatprep.subr.bf16.mxu0 0
        %1290 = vmatpush2.bf16.msra.mxu0 %v1222
        %1291 = vmatprep.subr.bf16.mxu0 0
        %1292 = vmatpush2.bf16.msra.mxu0 %v1221
        %1293 = vmatprep.mubr.bf16.mxu0 %v1058
        %1294 = vmatmul.mubr.bf16.gmra.mxu0 %v1055
        %v1295 = vpop.f32.mrf.mxu0
        %v1296 = vadd.f32 %v1115, %v1295
        %v1297 = vpop.f32.mrf.mxu0
        %v1298 = vpop.f32.mrf.mxu0
        %v1299 = vpop.f32.mrf.mxu0
        %1300 = vdwg.mxu0
        %1301 = vmatprep.subr.bf16.mxu0 0
        %1302 = vmatpush1.bf16.msra.mxu0 %v1236
        %1303 = vmatprep.subr.bf16.mxu0 0
        %1304 = vmatpush1.bf16.msra.mxu0 %v1235
        %1305 = vmatprep.subr.bf16.mxu0 0
        %1306 = vmatpush1.bf16.msra.mxu0 %v1234
        %1307 = vmatprep.subr.bf16.mxu0 0
        %1308 = vmatpush1.bf16.msra.mxu0 %v1233
        %1309 = vmatprep.subr.bf16.mxu0 0
        %1310 = vmatpush1.bf16.msra.mxu0 %v1232
        %1311 = vmatprep.subr.bf16.mxu0 0
        %1312 = vmatpush1.bf16.msra.mxu0 %v1231
        %1313 = vmatprep.subr.bf16.mxu0 0
        %1314 = vmatpush1.bf16.msra.mxu0 %v1230
        %1315 = vmatprep.subr.bf16.mxu0 0
        %1316 = vmatpush1.bf16.msra.mxu0 %v1229
        %1317 = vmatprep.subr.bf16.mxu0 0
        %1318 = vmatpush2.bf16.msra.mxu0 0
        %1319 = vmatprep.subr.bf16.mxu0 0
        %1320 = vmatpush2.bf16.msra.mxu0 0
        %1321 = vmatprep.subr.bf16.mxu0 0
        %1322 = vmatpush2.bf16.msra.mxu0 0
        %1323 = vmatprep.subr.bf16.mxu0 0
        %1324 = vmatpush2.bf16.msra.mxu0 0
        %1325 = vmatprep.subr.bf16.mxu0 0
        %1326 = vmatpush2.bf16.msra.mxu0 0
        %1327 = vmatprep.subr.bf16.mxu0 0
        %1328 = vmatpush2.bf16.msra.mxu0 0
        %1329 = vmatprep.subr.bf16.mxu0 0
        %1330 = vmatpush2.bf16.msra.mxu0 0
        %1331 = vmatprep.subr.bf16.mxu0 0
        %1332 = vmatpush2.bf16.msra.mxu0 0
        %1333 = vmatprep.mubr.bf16.mxu0 0
        %1334 = vmatmul.mubr.bf16.gmra.mxu0 %v1061
        %v1335 = vpop.f32.mrf.mxu0
        %v1336 = vadd.f32 %v1296, %v1335
        %v1337 = vpop.f32.mrf.mxu0
        %v1338 = vpop.f32.mrf.mxu0
        %v1339 = vpop.f32.mrf.mxu0
        %1340 = vdwg.mxu0
        %v1341 = vmul.f32 %v1336, 0.5
        %v1342 = vmul.f32 %v1336, 0.70710677
        %vm1343 = vcmp.ge.f32.partialorder %v1342, 0.0
        %v1344 = vsel %vm1343, 1.0, -1.0
        %v1345 = vmul.f32 %v1342, %v1344
        %v1346 = vmul.f32 %v1345, 0.3275911
        %v1347 = vadd.f32 %v1346, 1.0
        %v1348 = vrcp.pop %v1347
        %v1349 = vmul.f32 %v1347, %v1348
        %v1350 = vsub.f32 2.0, %v1349
        %v1351 = vmul.f32 %v1348, %v1350
        %v1352 = vmul.f32 %v1351, 1.0614054
        %v1353 = vadd.f32 %v1352, -1.4531521
        %v1354 = vmul.f32 %v1353, %v1351
        %v1355 = vadd.f32 %v1354, 1.4214138
        %v1356 = vmul.f32 %v1355, %v1351
        %v1357 = vadd.f32 %v1356, -0.28449672
        %v1358 = vmul.f32 %v1357, %v1351
        %v1359 = vadd.f32 %v1358, 0.2548296
        %v1360 = vmul.f32 %v1359, %v1351
        %v1361 = vsub.f32 0.0, %v1345
        %v1362 = vmul.f32 %v1361, %v1345
        %v1363 = vmul.f32 %v1362, 1.442695
        %v1364 = vpow.pop %v1363
        %v1365 = vmul.f32 %v1360, %v1364
        %v1366 = vsub.f32 1.0, %v1365
        %v1367 = vmul.f32 %v1344, %v1366
        %v1368 = vadd.f32 %v1367, 1.0
        %v1369 = vmul.f32 %v1341, %v1368
        %1370 = vst [vmem:[%s301] sm:$0xff] %v1369
        %s1371 = sand.u32 %s183, 1
        %s1372 = scalar_lea.sflag [#allocation6], %s1371
        %s1373 = sand.u32 %s183, 1
        %s1374 = smul.addr %s1373, 8
        %s1375 = scalar_lea.vmem [#allocation9], %s1374
        // Predicated region
        $region57: #{tpu_custom_call.1} parent=47 // pred_check
          %p1376 = pneg %p193
        $region58: #{tpu_custom_call.1} parent=47 // pred_check_branch
          %1378 = sbr.rel (%p1376) target = $region60
        $region59: #{tpu_custom_call.1} parent=47 // pred_region
          %s1380 = ssub.s32 128, 128
          %1381 = vsyncadd %s1372, %s1380
          %s1382 = smul.addr %s23, 128
          %s1383 = scalar_lea.hbm %s7, %s1382
          %s1385 = sshll.u32 %s1375, 4
          %s1386 = int_to_ptr.vmem [resolvable:$true] %s1385
          %1388 = dma.vmem_to_hbm [thread:$0]  %s1386, 128, %s1383, %s1372
        $region60: #{tpu_custom_call.1} parent=47 // pred_fallthru
          _
      $region48: #{tpu_custom_call.1} parent=5 // pred_fallthru
        _
      %p1389 = scmp.le.s32.totalorder 2, %s18
      // Predicated region
      $region61: #{tpu_custom_call.1} parent=5 // pred_check
        %p1390 = pneg %p1389
      $region62: #{tpu_custom_call.1} parent=5 // pred_check_branch
        %1392 = sbr.rel (%p1390) target = $region64
      $region63: #{tpu_custom_call.1} parent=5 // pred_region
        %s1393 = ssub.s32 %s18, 2
        // Predicated region
        $region65: #{tpu_custom_call.1} parent=63 // pred_check
          %p1394 = pneg %p199
        $region66: #{tpu_custom_call.1} parent=63 // pred_check_branch
          %1396 = sbr.rel (%p1394) target = $region68
        $region67: #{tpu_custom_call.1} parent=63 // pred_region
          %s1397 = sand.u32 %s184, 1
          %s1398 = scalar_lea.sflag [#allocation6], %s1397
          %s1399 = sand.u32 %s184, 1
          %s1400 = smul.addr %s1399, 8
          %s1401 = scalar_lea.vmem [#allocation9], %s1400
          %1402 = dma.done %s1398, 128
        $region68: #{tpu_custom_call.1} parent=63 // pred_fallthru
          _
      $region64: #{tpu_custom_call.1} parent=5 // pred_fallthru
        _
    $region6: #{tpu_custom_call.1} parent=1 // loop_footer
      %s22 = sadd.s32 1, %s18
    $region7: #{tpu_custom_call.1} parent=1 // loop_footer_branch
      %17 = sbr.rel target = $region3
    $region8: #{tpu_custom_call.1} parent=1 // loop_exit
      _
    %1403 = vsyncpa [#allocation5], 1
    %s1404 = scalar_lea.sflag [#allocation5], 1
    %1405 = vsyncpa %s1404, 1
    %1406 = vsyncpa [#allocation8], 1
    %1407 = vsyncpa [#allocation6], 1
    %s1408 = scalar_lea.sflag [#allocation6], 1
    %1409 = vsyncpa %s1408, 1

</llo_original>
